<compile_context>
chip_gen: v7x
topology: tpu7x:2x2x1
jax: 0.10.0
libtpu: 0.0.40
codegen_flags: <defaults>
</compile_context>

<pallas_src>
import functools
import math

import jax
import jax.numpy as jnp
from jax.experimental import pallas as pl
from jax.experimental.pallas import tpu as pltpu

EMB_DIM = 32
N_LAYERS = 4
RATIO = 0.8
BN_EPS = 1e-5
NEG = -3.0e38  # masked-max sentinel (finite in f32; never downcast to bf16)


def _round_up(v, m):
    return ((v + m - 1) // m) * m


# ----------------------------------------------------------------------------
# Fused per-graph forward kernel (one grid step == one graph)
# ----------------------------------------------------------------------------
def _make_kernel(n_layers):
    """Kernel ref order:
       per-graph blocks : a(1,S,S) bf16, raw(1,S,R) f32, pad(1,S,1),
                          k1(1,1,1), k2(1,1,1), invc(1,1,1)
       layer 0 (encoder+BN folded): w0(R,E) bf16, b0e(1,E), b0(1,E),
                                    w0b(E,E) bf16, b0b(1,E)
       layers 1..n-1    : [w1 bf16, b1, w2 bf16, b2] each
       pools            : wcat1(E,2) bf16, brel1(1,1), wcat2(E,2) bf16, brel2(1,1)
       output           : (8, out_cols) f32 block; row 0 = [mean || max]
    """

    def kernel(*refs):
        a_ref, raw_ref, pad_ref, k1_ref, k2_ref, invc_ref = refs[:6]
        lyr = refs[6:6 + 5 + 4 * (n_layers - 1)]
        poff = 6 + 5 + 4 * (n_layers - 1)
        wc1_ref, br1_ref, wc2_ref, br2_ref = refs[poff:poff + 4]
        out_ref = refs[-1]

        f32, bf16 = jnp.float32, jnp.bfloat16
        A = a_ref[0]                       # (S, S) bf16 (exact small ints)
        raw = raw_ref[0]                   # (S, R) f32
        active = pad_ref[0]                # (S, 1), 1.0 = real node, 0.0 = padding
        S = A.shape[0]
        emb = lyr[0].shape[1]
        out_cols = out_ref.shape[1]

        # Static index helpers (in-kernel iotas; no DMA'd N^2 constants).
        row_i = jax.lax.broadcasted_iota(jnp.int32, (S, S), 0)
        col_j = jax.lax.broadcasted_iota(jnp.int32, (S, S), 1)
        diag = row_i == col_j
        j_before_i = col_j < row_i

        def sag_pool(x, active, kval, wcat_ref, brel_ref):
            # GraphConv scorer: projections fused into one (E,2) matmul,
            # aggregation reassociated so the S^2 matmul runs at width 1.
            v = jnp.dot(x.astype(bf16), wcat_ref[...],
                        preferred_element_type=f32)              # (S, 2) = [rel|root]
            s_agg = jnp.dot(A, v[:, 0:1].astype(bf16),
                            preferred_element_type=f32)          # A @ (x @ w_rel)
            score = jnp.tanh(s_agg + v[:, 1:2] + brel_ref[...])  # (S, 1), f32 (EUP)

            # Row form of the score column: diagonal-select + sublane reduce (XLU).
            # Bit-exact copy of score -> the f32 tie comparison below is stable.
            score_row = jnp.sum(jnp.where(diag, score, 0.0),
                                axis=0, keepdims=True)           # (1, S)
            gt = score_row > score                               # score_j > score_i
            eq = score_row == score
            beats = jnp.where(
                jnp.logical_or(gt, jnp.logical_and(eq, j_before_i)), 1.0, 0.0)
            # rank_i = #active nodes strictly ahead of i in a stable descending
            # sort (ties by index; PyG's topk tie order is unspecified anyway).
            rank = jnp.dot(beats, active, preferred_element_type=f32)   # (S, 1)
            new_active = jnp.where(rank < kval, 1.0, 0.0) * active
            # Dropping nodes == zeroing their rows; dropped rows then contribute
            # exact 0.0 to every later matmul (equivalent to PyG's filter_adj).
            return x * score * new_active, new_active

        # ---- layer 0 (node encoder folded into the first GIN linear) --------
        # (A+I)(raw@We + be) @ w1' == (A@raw + raw) @ (We@w1') + (deg+1)*(be@w1')
        w0_ref, b0e_ref, b0_ref, w0b_ref, b0b_ref = lyr[:5]
        deg1 = jnp.sum(A.astype(f32), axis=1, keepdims=True) + 1.0       # (S, 1)
        agg = jnp.dot(A, raw.astype(bf16), preferred_element_type=f32) + raw
        h = jnp.dot(agg.astype(bf16), w0_ref[...], preferred_element_type=f32)
        h = jnp.maximum(h + deg1 * b0e_ref[...] + b0_ref[...], 0.0)      # BN+ReLU
        h = jnp.dot(h.astype(bf16), w0b_ref[...],
                    preferred_element_type=f32) + b0b_ref[...]
        x = jnp.maximum(h, 0.0)                                          # BN+ReLU
        x = x * active                                  # zero the padding rows
        x, active = sag_pool(x, active, k1_ref[0], wc1_ref, br1_ref)
        # F.dropout(p=0.5) is the identity in eval mode.

        # ---- layers 1 .. n-1 -------------------------------------------------
        for li in range(1, n_layers):
            w1_ref, b1_ref, w2_ref, b2_ref = lyr[5 + 4 * (li - 1): 5 + 4 * li]
            # (A + I) @ x == A @ x + x  (eps = 0); the VPU add rides for free.
            agg = jnp.dot(A, x.astype(bf16), preferred_element_type=f32) + x
            h = jnp.dot(agg.astype(bf16), w1_ref[...],
                        preferred_element_type=f32) + b1_ref[...]
            h = jnp.maximum(h, 0.0)                     # inner BN (folded) + ReLU
            h = jnp.dot(h.astype(bf16), w2_ref[...],
                        preferred_element_type=f32) + b2_ref[...]
            x = jnp.maximum(h, 0.0)                     # outer BN (folded) + ReLU
            x = x * active                              # keep dropped rows at 0
            if li == n_layers - 1:
                x, active = sag_pool(x, active, k2_ref[0], wc2_ref, br2_ref)

        # ---- global mean / max pooling, one lane-dense (8, out_cols) store ---
        mean = jnp.sum(x, axis=0, keepdims=True) * invc_ref[0]           # (1, E)
        mx = jnp.max(jnp.where(active > 0.5, x, NEG),
                     axis=0, keepdims=True)                              # (1, E)
        # Place [mean || max] into one lane-dense row via two tiny exact 0/1
        # placement matmuls -> a single full-block store, no vst.msk partials.
        rp = jax.lax.broadcasted_iota(jnp.int32, (emb, out_cols), 0)
        cp = jax.lax.broadcasted_iota(jnp.int32, (emb, out_cols), 1)
        row = (jnp.dot(mean, jnp.where(cp == rp, 1.0, 0.0),
                       preferred_element_type=f32)
               + jnp.dot(mx, jnp.where(cp == rp + emb, 1.0, 0.0),
                         preferred_element_type=f32))                    # (1, out_cols)
        rr = jax.lax.broadcasted_iota(jnp.int32, (out_ref.shape[0], out_cols), 0)
        out_ref[...] = jnp.where(rr == 0, row, 0.0)

    return kernel


# ----------------------------------------------------------------------------
# Host-side wrapper
# ----------------------------------------------------------------------------
@functools.partial(jax.jit, static_argnums=(3,))
def gin_forward(params, raw_x, A, sizes):
    """raw_x: (N, raw_dim); A: (N, N) dense adjacency, A[dst, src] = #edges;
    sizes: static per-graph node counts (graphs are contiguous row blocks,
    i.e. a standard PyG batch -> A is block-diagonal)."""
    sizes = tuple(int(s) for s in sizes)
    G = len(sizes)
    emb = EMB_DIM
    raw_dim = raw_x.shape[1]
    S = _round_up(max(sizes), 8)              # padded per-graph node count
    out_cols = _round_up(2 * emb, 128)

    # --- per-graph padded blocks ---------------------------------------------
    a_b, raw_b, pad_b, k1_l, k2_l = [], [], [], [], []
    off = 0
    for s in sizes:
        a_g = jax.lax.slice(A, (off, off), (off + s, off + s))
        a_b.append(jnp.pad(a_g, ((0, S - s), (0, S - s))))
        r_g = jax.lax.slice(raw_x, (off, 0), (off + s, raw_dim))
        raw_b.append(jnp.pad(r_g, ((0, S - s), (0, 0))))
        pad_b.append(jnp.pad(jnp.ones((s, 1), jnp.float32), ((0, S - s), (0, 0))))
        k1 = int(math.ceil(RATIO * s))         # survivors after pool1 (static)
        k2 = int(math.ceil(RATIO * k1))        # survivors after pool2 (static)
        k1_l.append(k1)
        k2_l.append(k2)
        off += s
    # bf16 A is exact for small integer edge multiplicities (< 256); gate the
    # cast if graphs can carry larger multi-edge counts.
    a_blk = jnp.stack(a_b).astype(jnp.bfloat16)            # (G, S, S)
    raw_blk = jnp.stack(raw_b)                              # (G, S, R) f32
    pad_blk = jnp.stack(pad_b)                              # (G, S, 1) f32
    k1_arr = jnp.asarray(k1_l, jnp.float32).reshape(G, 1, 1)
    k2_arr = jnp.asarray(k2_l, jnp.float32).reshape(G, 1, 1)
    invc = jnp.asarray([1.0 / k for k in k2_l], jnp.float32).reshape(G, 1, 1)

    # --- weight packing: BN already folded (init_params); fold the encoder into
    # layer 0's first linear and fuse each pool's two projections into (E, 2).
    bf = jnp.bfloat16
    w1_0, b1_0, w2_0, b2_0 = params["layers"][0]
    w0 = params["enc_w"] @ w1_0                            # (raw_dim, emb)
    b0e = params["enc_b"] @ w1_0                           # (1, emb)
    wc1 = jnp.concatenate([params["pool1"][0], params["pool1"][2]], axis=1)
    wc2 = jnp.concatenate([params["pool2"][0], params["pool2"][2]], axis=1)

    inputs = [a_blk, raw_blk, pad_blk, k1_arr, k2_arr, invc,
              w0.astype(bf), b0e, b1_0, w2_0.astype(bf), b2_0]
    for (w1, b1, w2, b2) in params["layers"][1:]:
        inputs += [w1.astype(bf), b1, w2.astype(bf), b2]
    inputs += [wc1.astype(bf), params["pool1"][1], wc2.astype(bf), params["pool2"][1]]

    def g_spec(arr):        # per-graph blocked input
        blk = (1,) + tuple(arr.shape[1:])
        return pl.BlockSpec(blk, lambda g, _nd=arr.ndim: (g,) + (0,) * (_nd - 1))

    def w_spec(arr):        # grid-invariant input (constant block -> fetched once)
        return pl.BlockSpec(tuple(arr.shape), lambda g, _nd=arr.ndim: (0,) * _nd)

    in_specs = [g_spec(a) for a in inputs[:6]] + [w_spec(a) for a in inputs[6:]]

    out_padded = pl.pallas_call(
        _make_kernel(N_LAYERS),
        grid=(G,),                                   # one independent graph per step
        in_specs=in_specs,
        out_specs=pl.BlockSpec((8, out_cols), lambda g: (g, 0)),
        out_shape=jax.ShapeDtypeStruct((G * 8, out_cols), jnp.float32),
        compiler_params=pltpu.CompilerParams(
            dimension_semantics=("parallel",),       # megacore-shardable on v7x
            vmem_limit_bytes=32 * 1024 * 1024),
    )(*inputs)
    return out_padded.reshape(G, 8, out_cols)[:, 0, :2 * emb]


# ----------------------------------------------------------------------------
# Parameters (deterministic, synthetic); eval-mode BN folded into the Linears
# ----------------------------------------------------------------------------
def _bn_scale_shift(key, dim):
    k1, k2, k3, k4 = jax.random.split(key, 4)
    gamma = 1.0 + 0.1 * jax.random.normal(k1, (dim,), jnp.float32)
    beta = 0.1 * jax.random.normal(k2, (dim,), jnp.float32)
    rmean = 0.1 * jax.random.normal(k3, (dim,), jnp.float32)
    rvar = 1.0 + 0.1 * jnp.abs(jax.random.normal(k4, (dim,), jnp.float32))
    scale = gamma / jnp.sqrt(rvar + BN_EPS)
    shift = beta - rmean * scale
    return scale.reshape(1, dim), shift.reshape(1, dim)


def init_params(key, raw_dim, input_dim, emb):
    keys = iter(jax.random.split(key, 64))

    def nrm(shape, scale=0.1):
        return scale * jax.random.normal(next(keys), shape, jnp.float32)

    params = {
        "enc_w": nrm((raw_dim, input_dim)),   # node_encoder := Linear(raw, in)
        "enc_b": nrm((1, input_dim)),
        "layers": [],
    }
    for i in range(N_LAYERS):
        in_ch = input_dim if i == 0 else emb
        w1, b1 = nrm((in_ch, emb)), nrm((1, emb))
        s1, t1 = _bn_scale_shift(next(keys), emb)   # BN inside the GIN MLP
        w2, b2 = nrm((emb, emb)), nrm((1, emb))
        s2, t2 = _bn_scale_shift(next(keys), emb)   # outer BN
        # Static eval-mode BatchNorm fold: (x@w + b)*s + t == x@(w*s) + (b*s+t)
        params["layers"].append((w1 * s1, b1 * s1 + t1, w2 * s2, b2 * s2 + t2))
    for name in ("pool1", "pool2"):
        # GraphConv(emb -> 1): (w_rel, b_rel, w_root)
        params[name] = (nrm((emb, 1)), nrm((1, 1)), nrm((emb, 1)))
    return params


# ----------------------------------------------------------------------------
# Demo graph construction
# ----------------------------------------------------------------------------
def build_edges(sizes):
    src, dst = [], []
    off = 0
    for s in sizes:
        for i in range(s):  # bidirectional ring per graph
            a, b = off + i, off + (i + 1) % s
            src += [a, b]
            dst += [b, a]
        src += [off, off + s // 2]  # one chord, both directions
        dst += [off + s // 2, off]
        off += s
    return jnp.asarray(src, jnp.int32), jnp.asarray(dst, jnp.int32)


if __name__ == "__main__":
    key = jax.random.PRNGKey(0)
    kx, kp = jax.random.split(key)

    sizes = (8, 5)              # 2 graphs; the second exercises the padding path
    N = sum(sizes)
    raw_dim, input_dim = 8, 16  # node_encoder: 8 -> 16; GIN layer 0: 16 -> 32

    raw_x = jax.random.normal(kx, (N, raw_dim), jnp.float32)
    src, dst = build_edges(sizes)
    A = jnp.zeros((N, N), jnp.float32).at[dst, src].add(1.0)

    params = init_params(kp, raw_dim, input_dim, EMB_DIM)
    out = gin_forward(params, raw_x, A, sizes)
    out = jax.block_until_ready(out)
    assert out.shape == (len(sizes), 2 * EMB_DIM)
    assert bool(jnp.all(jnp.isfinite(out)))
    print("KERNEL_OK")
</pallas_src>

<mosaic_0001>
module attributes {stable_mosaic.version = 11 : i64} {
  func.func @kernel(%arg0: i32, %arg1: memref<1x8x8xbf16, #tpu.memory_space<vmem>>, %arg2: memref<1x8x8xf32, #tpu.memory_space<vmem>>, %arg3: memref<1x8x1xf32, #tpu.memory_space<vmem>>, %arg4: memref<1x1x1xf32, #tpu.memory_space<vmem>>, %arg5: memref<1x1x1xf32, #tpu.memory_space<vmem>>, %arg6: memref<1x1x1xf32, #tpu.memory_space<vmem>>, %arg7: memref<8x32xbf16, #tpu.memory_space<vmem>>, %arg8: memref<1x32xf32, #tpu.memory_space<vmem>>, %arg9: memref<1x32xf32, #tpu.memory_space<vmem>>, %arg10: memref<32x32xbf16, #tpu.memory_space<vmem>>, %arg11: memref<1x32xf32, #tpu.memory_space<vmem>>, %arg12: memref<32x32xbf16, #tpu.memory_space<vmem>>, %arg13: memref<1x32xf32, #tpu.memory_space<vmem>>, %arg14: memref<32x32xbf16, #tpu.memory_space<vmem>>, %arg15: memref<1x32xf32, #tpu.memory_space<vmem>>, %arg16: memref<32x32xbf16, #tpu.memory_space<vmem>>, %arg17: memref<1x32xf32, #tpu.memory_space<vmem>>, %arg18: memref<32x32xbf16, #tpu.memory_space<vmem>>, %arg19: memref<1x32xf32, #tpu.memory_space<vmem>>, %arg20: memref<32x32xbf16, #tpu.memory_space<vmem>>, %arg21: memref<1x32xf32, #tpu.memory_space<vmem>>, %arg22: memref<32x32xbf16, #tpu.memory_space<vmem>>, %arg23: memref<1x32xf32, #tpu.memory_space<vmem>>, %arg24: memref<32x2xbf16, #tpu.memory_space<vmem>>, %arg25: memref<1x1xf32, #tpu.memory_space<vmem>>, %arg26: memref<32x2xbf16, #tpu.memory_space<vmem>>, %arg27: memref<1x1xf32, #tpu.memory_space<vmem>>, %arg28: memref<8x128xf32, #tpu.memory_space<vmem>>) attributes {dimension_semantics = [#tpu.dimension_semantics<parallel>], iteration_bounds = array<i64: 2>, scalar_prefetch = 0 : i64, scratch_operands = 0 : i64, tpu.core_type = #tpu.core_type<tc>, window_params = [{transform_indices = @transform_0, window_bounds = array<i64: 1, 8, 8>}, {transform_indices = @transform_1, window_bounds = array<i64: 1, 8, 8>}, {transform_indices = @transform_2, window_bounds = array<i64: 1, 8, 1>}, {transform_indices = @transform_3, window_bounds = array<i64: 1, 1, 1>}, {transform_indices = @transform_4, window_bounds = array<i64: 1, 1, 1>}, {transform_indices = @transform_5, window_bounds = array<i64: 1, 1, 1>}, {pipeline_mode = #tpu.pipeline_mode<synchronous>, transform_indices = @transform_6, window_bounds = array<i64: 8, 32>}, {pipeline_mode = #tpu.pipeline_mode<synchronous>, transform_indices = @transform_7, window_bounds = array<i64: 1, 32>}, {pipeline_mode = #tpu.pipeline_mode<synchronous>, transform_indices = @transform_8, window_bounds = array<i64: 1, 32>}, {pipeline_mode = #tpu.pipeline_mode<synchronous>, transform_indices = @transform_9, window_bounds = array<i64: 32, 32>}, {pipeline_mode = #tpu.pipeline_mode<synchronous>, transform_indices = @transform_10, window_bounds = array<i64: 1, 32>}, {pipeline_mode = #tpu.pipeline_mode<synchronous>, transform_indices = @transform_11, window_bounds = array<i64: 32, 32>}, {pipeline_mode = #tpu.pipeline_mode<synchronous>, transform_indices = @transform_12, window_bounds = array<i64: 1, 32>}, {pipeline_mode = #tpu.pipeline_mode<synchronous>, transform_indices = @transform_13, window_bounds = array<i64: 32, 32>}, {pipeline_mode = #tpu.pipeline_mode<synchronous>, transform_indices = @transform_14, window_bounds = array<i64: 1, 32>}, {pipeline_mode = #tpu.pipeline_mode<synchronous>, transform_indices = @transform_15, window_bounds = array<i64: 32, 32>}, {pipeline_mode = #tpu.pipeline_mode<synchronous>, transform_indices = @transform_16, window_bounds = array<i64: 1, 32>}, {pipeline_mode = #tpu.pipeline_mode<synchronous>, transform_indices = @transform_17, window_bounds = array<i64: 32, 32>}, {pipeline_mode = #tpu.pipeline_mode<synchronous>, transform_indices = @transform_18, window_bounds = array<i64: 1, 32>}, {pipeline_mode = #tpu.pipeline_mode<synchronous>, transform_indices = @transform_19, window_bounds = array<i64: 32, 32>}, {pipeline_mode = #tpu.pipeline_mode<synchronous>, transform_indices = @transform_20, window_bounds = array<i64: 1, 32>}, {pipeline_mode = #tpu.pipeline_mode<synchronous>, transform_indices = @transform_21, window_bounds = array<i64: 32, 32>}, {pipeline_mode = #tpu.pipeline_mode<synchronous>, transform_indices = @transform_22, window_bounds = array<i64: 1, 32>}, {pipeline_mode = #tpu.pipeline_mode<synchronous>, transform_indices = @transform_23, window_bounds = array<i64: 32, 2>}, {pipeline_mode = #tpu.pipeline_mode<synchronous>, transform_indices = @transform_24, window_bounds = array<i64: 1, 1>}, {pipeline_mode = #tpu.pipeline_mode<synchronous>, transform_indices = @transform_25, window_bounds = array<i64: 32, 2>}, {pipeline_mode = #tpu.pipeline_mode<synchronous>, transform_indices = @transform_26, window_bounds = array<i64: 1, 1>}, {transform_indices = @transform_27, window_bounds = array<i64: 8, 128>}]} {
    %c0 = arith.constant 0 : index
    %c0_0 = arith.constant 0 : index
    %c0_1 = arith.constant 0 : index
    %0 = vector.load %arg1[%c0, %c0_0, %c0_1] : memref<1x8x8xbf16, #tpu.memory_space<vmem>>, vector<1x8x8xbf16>
    %1 = vector.shape_cast %0 : vector<1x8x8xbf16> to vector<8x8xbf16>
    %c0_2 = arith.constant 0 : index
    %c0_3 = arith.constant 0 : index
    %c0_4 = arith.constant 0 : index
    %2 = vector.load %arg2[%c0_2, %c0_3, %c0_4] : memref<1x8x8xf32, #tpu.memory_space<vmem>>, vector<1x8x8xf32>
    %3 = vector.shape_cast %2 : vector<1x8x8xf32> to vector<8x8xf32>
    %c0_5 = arith.constant 0 : index
    %c0_6 = arith.constant 0 : index
    %c0_7 = arith.constant 0 : index
    %4 = vector.load %arg3[%c0_5, %c0_6, %c0_7] : memref<1x8x1xf32, #tpu.memory_space<vmem>>, vector<1x8x1xf32>
    %5 = vector.shape_cast %4 : vector<1x8x1xf32> to vector<8x1xf32>
    %6 = tpu.iota {dimensions = array<i32: 0>} : vector<8x8xi32>
    %7 = tpu.iota {dimensions = array<i32: 1>} : vector<8x8xi32>
    %8 = arith.cmpi eq, %6, %7 : vector<8x8xi32>
    %9 = arith.cmpi slt, %7, %6 : vector<8x8xi32>
    %10 = arith.extf %1 : vector<8x8xbf16> to vector<8x8xf32>
    %cst = arith.constant dense<0.000000e+00> : vector<8xf32>
    %11 = vector.multi_reduction <add>, %10, %cst [1] : vector<8x8xf32> to vector<8xf32>
    %12 = vector.shape_cast %11 : vector<8xf32> to vector<8x1xf32>
    %cst_8 = arith.constant 1.000000e+00 : f32
    %13 = vector.broadcast %cst_8 : f32 to vector<8x1xf32>
    %14 = arith.addf %12, %13 : vector<8x1xf32>
    %15 = arith.truncf %3 : vector<8x8xf32> to vector<8x8xbf16>
    %cst_9 = arith.constant dense<0.000000e+00> : vector<8x8xf32>
    %16 = tpu.matmul %1, %15, %cst_9 {dimension_numbers = #tpu.dot_dimension_numbers<[1], [0], [0], [1], [0, 0, 1, 1], [], []>} : vector<8x8xbf16>, vector<8x8xbf16>, vector<8x8xf32> -> vector<8x8xf32>
    %17 = arith.addf %16, %3 : vector<8x8xf32>
    %18 = arith.truncf %17 : vector<8x8xf32> to vector<8x8xbf16>
    %c0_10 = arith.constant 0 : index
    %c0_11 = arith.constant 0 : index
    %19 = vector.load %arg7[%c0_10, %c0_11] : memref<8x32xbf16, #tpu.memory_space<vmem>>, vector<8x32xbf16>
    %cst_12 = arith.constant dense<0.000000e+00> : vector<8x32xf32>
    %20 = tpu.matmul %18, %19, %cst_12 {dimension_numbers = #tpu.dot_dimension_numbers<[1], [0], [0], [1], [0, 0, 1, 1], [], []>} : vector<8x8xbf16>, vector<8x32xbf16>, vector<8x32xf32> -> vector<8x32xf32>
    %c0_13 = arith.constant 0 : index
    %c0_14 = arith.constant 0 : index
    %21 = vector.load %arg8[%c0_13, %c0_14] : memref<1x32xf32, #tpu.memory_space<vmem>>, vector<1x32xf32>
    %22 = vector.broadcast %14 : vector<8x1xf32> to vector<8x32xf32>
    %23 = vector.broadcast %21 : vector<1x32xf32> to vector<8x32xf32>
    %24 = arith.mulf %22, %23 : vector<8x32xf32>
    %25 = arith.addf %20, %24 : vector<8x32xf32>
    %c0_15 = arith.constant 0 : index
    %c0_16 = arith.constant 0 : index
    %26 = vector.load %arg9[%c0_15, %c0_16] : memref<1x32xf32, #tpu.memory_space<vmem>>, vector<1x32xf32>
    %27 = vector.broadcast %26 : vector<1x32xf32> to vector<8x32xf32>
    %28 = arith.addf %25, %27 : vector<8x32xf32>
    %cst_17 = arith.constant 0.000000e+00 : f32
    %29 = vector.broadcast %cst_17 : f32 to vector<8x32xf32>
    %30 = arith.maximumf %28, %29 : vector<8x32xf32>
    %31 = arith.truncf %30 : vector<8x32xf32> to vector<8x32xbf16>
    %c0_18 = arith.constant 0 : index
    %c0_19 = arith.constant 0 : index
    %32 = vector.load %arg10[%c0_18, %c0_19] : memref<32x32xbf16, #tpu.memory_space<vmem>>, vector<32x32xbf16>
    %cst_20 = arith.constant dense<0.000000e+00> : vector<8x32xf32>
    %33 = tpu.matmul %31, %32, %cst_20 {dimension_numbers = #tpu.dot_dimension_numbers<[1], [0], [0], [1], [0, 0, 1, 1], [], []>} : vector<8x32xbf16>, vector<32x32xbf16>, vector<8x32xf32> -> vector<8x32xf32>
    %c0_21 = arith.constant 0 : index
    %c0_22 = arith.constant 0 : index
    %34 = vector.load %arg11[%c0_21, %c0_22] : memref<1x32xf32, #tpu.memory_space<vmem>>, vector<1x32xf32>
    %35 = vector.broadcast %34 : vector<1x32xf32> to vector<8x32xf32>
    %36 = arith.addf %33, %35 : vector<8x32xf32>
    %cst_23 = arith.constant 0.000000e+00 : f32
    %37 = vector.broadcast %cst_23 : f32 to vector<8x32xf32>
    %38 = arith.maximumf %36, %37 : vector<8x32xf32>
    %39 = vector.broadcast %5 : vector<8x1xf32> to vector<8x32xf32>
    %40 = arith.mulf %38, %39 : vector<8x32xf32>
    %c0_24 = arith.constant 0 : index
    %c0_25 = arith.constant 0 : index
    %c0_26 = arith.constant 0 : index
    %41 = vector.load %arg4[%c0_24, %c0_25, %c0_26] : memref<1x1x1xf32, #tpu.memory_space<vmem>>, vector<1x1x1xf32>
    %42 = vector.shape_cast %41 : vector<1x1x1xf32> to vector<1x1xf32>
    %43 = arith.truncf %40 : vector<8x32xf32> to vector<8x32xbf16>
    %c0_27 = arith.constant 0 : index
    %c0_28 = arith.constant 0 : index
    %44 = vector.load %arg24[%c0_27, %c0_28] : memref<32x2xbf16, #tpu.memory_space<vmem>>, vector<32x2xbf16>
    %cst_29 = arith.constant dense<0.000000e+00> : vector<8x2xf32>
    %45 = tpu.matmul %43, %44, %cst_29 {dimension_numbers = #tpu.dot_dimension_numbers<[1], [0], [0], [1], [0, 0, 1, 1], [], []>} : vector<8x32xbf16>, vector<32x2xbf16>, vector<8x2xf32> -> vector<8x2xf32>
    %46 = vector.extract_strided_slice %45 {offsets = [0, 0], sizes = [8, 1], strides = [1, 1]} : vector<8x2xf32> to vector<8x1xf32>
    %47 = arith.truncf %46 : vector<8x1xf32> to vector<8x1xbf16>
    %cst_30 = arith.constant dense<0.000000e+00> : vector<8x1xf32>
    %48 = tpu.matmul %1, %47, %cst_30 {dimension_numbers = #tpu.dot_dimension_numbers<[1], [0], [0], [1], [0, 0, 1, 1], [], []>} : vector<8x8xbf16>, vector<8x1xbf16>, vector<8x1xf32> -> vector<8x1xf32>
    %49 = vector.extract_strided_slice %45 {offsets = [0, 1], sizes = [8, 1], strides = [1, 1]} : vector<8x2xf32> to vector<8x1xf32>
    %50 = arith.addf %48, %49 : vector<8x1xf32>
    %c0_31 = arith.constant 0 : index
    %c0_32 = arith.constant 0 : index
    %51 = vector.load %arg25[%c0_31, %c0_32] : memref<1x1xf32, #tpu.memory_space<vmem>>, vector<1x1xf32>
    %52 = vector.broadcast %51 : vector<1x1xf32> to vector<8x1xf32>
    %53 = arith.addf %50, %52 : vector<8x1xf32>
    %54 = math.tanh %53 : vector<8x1xf32>
    %cst_33 = arith.constant 0.000000e+00 : f32
    %55 = vector.shape_cast %54 : vector<8x1xf32> to vector<8x1xf32>
    %56 = vector.broadcast %55 : vector<8x1xf32> to vector<8x8xf32>
    %57 = vector.broadcast %cst_33 : f32 to vector<8x8xf32>
    %58 = arith.select %8, %56, %57 : vector<8x8xi1>, vector<8x8xf32>
    %cst_34 = arith.constant dense<0.000000e+00> : vector<8xf32>
    %59 = vector.multi_reduction <add>, %58, %cst_34 [0] : vector<8x8xf32> to vector<8xf32>
    %60 = vector.shape_cast %59 : vector<8xf32> to vector<1x8xf32>
    %61 = vector.broadcast %60 : vector<1x8xf32> to vector<8x8xf32>
    %62 = vector.broadcast %54 : vector<8x1xf32> to vector<8x8xf32>
    %63 = arith.cmpf ogt, %61, %62 : vector<8x8xf32>
    %64 = vector.broadcast %60 : vector<1x8xf32> to vector<8x8xf32>
    %65 = vector.broadcast %54 : vector<8x1xf32> to vector<8x8xf32>
    %66 = arith.cmpf oeq, %64, %65 : vector<8x8xf32>
    %67 = arith.andi %66, %9 : vector<8x8xi1>
    %68 = arith.ori %63, %67 : vector<8x8xi1>
    %cst_35 = arith.constant 1.000000e+00 : f32
    %cst_36 = arith.constant 0.000000e+00 : f32
    %69 = vector.broadcast %cst_35 : f32 to vector<8x8xf32>
    %70 = vector.broadcast %cst_36 : f32 to vector<8x8xf32>
    %71 = arith.select %68, %69, %70 : vector<8x8xi1>, vector<8x8xf32>
    %cst_37 = arith.constant dense<0.000000e+00> : vector<8x1xf32>
    %72 = tpu.matmul %71, %5, %cst_37 {dimension_numbers = #tpu.dot_dimension_numbers<[1], [0], [0], [1], [0, 0, 1, 1], [], []>} : vector<8x8xf32>, vector<8x1xf32>, vector<8x1xf32> -> vector<8x1xf32>
    %73 = vector.broadcast %42 : vector<1x1xf32> to vector<8x1xf32>
    %74 = arith.cmpf olt, %72, %73 : vector<8x1xf32>
    %cst_38 = arith.constant 1.000000e+00 : f32
    %cst_39 = arith.constant 0.000000e+00 : f32
    %75 = vector.broadcast %cst_38 : f32 to vector<8x1xf32>
    %76 = vector.broadcast %cst_39 : f32 to vector<8x1xf32>
    %77 = arith.select %74, %75, %76 : vector<8x1xi1>, vector<8x1xf32>
    %78 = arith.mulf %77, %5 : vector<8x1xf32>
    %79 = vector.broadcast %54 : vector<8x1xf32> to vector<8x32xf32>
    %80 = arith.mulf %40, %79 : vector<8x32xf32>
    %81 = vector.broadcast %78 : vector<8x1xf32> to vector<8x32xf32>
    %82 = arith.mulf %80, %81 : vector<8x32xf32>
    %83 = arith.truncf %82 : vector<8x32xf32> to vector<8x32xbf16>
    %cst_40 = arith.constant dense<0.000000e+00> : vector<8x32xf32>
    %84 = tpu.matmul %1, %83, %cst_40 {dimension_numbers = #tpu.dot_dimension_numbers<[1], [0], [0], [1], [0, 0, 1, 1], [], []>} : vector<8x8xbf16>, vector<8x32xbf16>, vector<8x32xf32> -> vector<8x32xf32>
    %85 = arith.addf %84, %82 : vector<8x32xf32>
    %86 = arith.truncf %85 : vector<8x32xf32> to vector<8x32xbf16>
    %c0_41 = arith.constant 0 : index
    %c0_42 = arith.constant 0 : index
    %87 = vector.load %arg12[%c0_41, %c0_42] : memref<32x32xbf16, #tpu.memory_space<vmem>>, vector<32x32xbf16>
    %cst_43 = arith.constant dense<0.000000e+00> : vector<8x32xf32>
    %88 = tpu.matmul %86, %87, %cst_43 {dimension_numbers = #tpu.dot_dimension_numbers<[1], [0], [0], [1], [0, 0, 1, 1], [], []>} : vector<8x32xbf16>, vector<32x32xbf16>, vector<8x32xf32> -> vector<8x32xf32>
    %c0_44 = arith.constant 0 : index
    %c0_45 = arith.constant 0 : index
    %89 = vector.load %arg13[%c0_44, %c0_45] : memref<1x32xf32, #tpu.memory_space<vmem>>, vector<1x32xf32>
    %90 = vector.broadcast %89 : vector<1x32xf32> to vector<8x32xf32>
    %91 = arith.addf %88, %90 : vector<8x32xf32>
    %cst_46 = arith.constant 0.000000e+00 : f32
    %92 = vector.broadcast %cst_46 : f32 to vector<8x32xf32>
    %93 = arith.maximumf %91, %92 : vector<8x32xf32>
    %94 = arith.truncf %93 : vector<8x32xf32> to vector<8x32xbf16>
    %c0_47 = arith.constant 0 : index
    %c0_48 = arith.constant 0 : index
    %95 = vector.load %arg14[%c0_47, %c0_48] : memref<32x32xbf16, #tpu.memory_space<vmem>>, vector<32x32xbf16>
    %cst_49 = arith.constant dense<0.000000e+00> : vector<8x32xf32>
    %96 = tpu.matmul %94, %95, %cst_49 {dimension_numbers = #tpu.dot_dimension_numbers<[1], [0], [0], [1], [0, 0, 1, 1], [], []>} : vector<8x32xbf16>, vector<32x32xbf16>, vector<8x32xf32> -> vector<8x32xf32>
    %c0_50 = arith.constant 0 : index
    %c0_51 = arith.constant 0 : index
    %97 = vector.load %arg15[%c0_50, %c0_51] : memref<1x32xf32, #tpu.memory_space<vmem>>, vector<1x32xf32>
    %98 = vector.broadcast %97 : vector<1x32xf32> to vector<8x32xf32>
    %99 = arith.addf %96, %98 : vector<8x32xf32>
    %cst_52 = arith.constant 0.000000e+00 : f32
    %100 = vector.broadcast %cst_52 : f32 to vector<8x32xf32>
    %101 = arith.maximumf %99, %100 : vector<8x32xf32>
    %102 = vector.broadcast %78 : vector<8x1xf32> to vector<8x32xf32>
    %103 = arith.mulf %101, %102 : vector<8x32xf32>
    %104 = arith.truncf %103 : vector<8x32xf32> to vector<8x32xbf16>
    %cst_53 = arith.constant dense<0.000000e+00> : vector<8x32xf32>
    %105 = tpu.matmul %1, %104, %cst_53 {dimension_numbers = #tpu.dot_dimension_numbers<[1], [0], [0], [1], [0, 0, 1, 1], [], []>} : vector<8x8xbf16>, vector<8x32xbf16>, vector<8x32xf32> -> vector<8x32xf32>
    %106 = arith.addf %105, %103 : vector<8x32xf32>
    %107 = arith.truncf %106 : vector<8x32xf32> to vector<8x32xbf16>
    %c0_54 = arith.constant 0 : index
    %c0_55 = arith.constant 0 : index
    %108 = vector.load %arg16[%c0_54, %c0_55] : memref<32x32xbf16, #tpu.memory_space<vmem>>, vector<32x32xbf16>
    %cst_56 = arith.constant dense<0.000000e+00> : vector<8x32xf32>
    %109 = tpu.matmul %107, %108, %cst_56 {dimension_numbers = #tpu.dot_dimension_numbers<[1], [0], [0], [1], [0, 0, 1, 1], [], []>} : vector<8x32xbf16>, vector<32x32xbf16>, vector<8x32xf32> -> vector<8x32xf32>
    %c0_57 = arith.constant 0 : index
    %c0_58 = arith.constant 0 : index
    %110 = vector.load %arg17[%c0_57, %c0_58] : memref<1x32xf32, #tpu.memory_space<vmem>>, vector<1x32xf32>
    %111 = vector.broadcast %110 : vector<1x32xf32> to vector<8x32xf32>
    %112 = arith.addf %109, %111 : vector<8x32xf32>
    %cst_59 = arith.constant 0.000000e+00 : f32
    %113 = vector.broadcast %cst_59 : f32 to vector<8x32xf32>
    %114 = arith.maximumf %112, %113 : vector<8x32xf32>
    %115 = arith.truncf %114 : vector<8x32xf32> to vector<8x32xbf16>
    %c0_60 = arith.constant 0 : index
    %c0_61 = arith.constant 0 : index
    %116 = vector.load %arg18[%c0_60, %c0_61] : memref<32x32xbf16, #tpu.memory_space<vmem>>, vector<32x32xbf16>
    %cst_62 = arith.constant dense<0.000000e+00> : vector<8x32xf32>
    %117 = tpu.matmul %115, %116, %cst_62 {dimension_numbers = #tpu.dot_dimension_numbers<[1], [0], [0], [1], [0, 0, 1, 1], [], []>} : vector<8x32xbf16>, vector<32x32xbf16>, vector<8x32xf32> -> vector<8x32xf32>
    %c0_63 = arith.constant 0 : index
    %c0_64 = arith.constant 0 : index
    %118 = vector.load %arg19[%c0_63, %c0_64] : memref<1x32xf32, #tpu.memory_space<vmem>>, vector<1x32xf32>
    %119 = vector.broadcast %118 : vector<1x32xf32> to vector<8x32xf32>
    %120 = arith.addf %117, %119 : vector<8x32xf32>
    %cst_65 = arith.constant 0.000000e+00 : f32
    %121 = vector.broadcast %cst_65 : f32 to vector<8x32xf32>
    %122 = arith.maximumf %120, %121 : vector<8x32xf32>
    %123 = vector.broadcast %78 : vector<8x1xf32> to vector<8x32xf32>
    %124 = arith.mulf %122, %123 : vector<8x32xf32>
    %125 = arith.truncf %124 : vector<8x32xf32> to vector<8x32xbf16>
    %cst_66 = arith.constant dense<0.000000e+00> : vector<8x32xf32>
    %126 = tpu.matmul %1, %125, %cst_66 {dimension_numbers = #tpu.dot_dimension_numbers<[1], [0], [0], [1], [0, 0, 1, 1], [], []>} : vector<8x8xbf16>, vector<8x32xbf16>, vector<8x32xf32> -> vector<8x32xf32>
    %127 = arith.addf %126, %124 : vector<8x32xf32>
    %128 = arith.truncf %127 : vector<8x32xf32> to vector<8x32xbf16>
    %c0_67 = arith.constant 0 : index
    %c0_68 = arith.constant 0 : index
    %129 = vector.load %arg20[%c0_67, %c0_68] : memref<32x32xbf16, #tpu.memory_space<vmem>>, vector<32x32xbf16>
    %cst_69 = arith.constant dense<0.000000e+00> : vector<8x32xf32>
    %130 = tpu.matmul %128, %129, %cst_69 {dimension_numbers = #tpu.dot_dimension_numbers<[1], [0], [0], [1], [0, 0, 1, 1], [], []>} : vector<8x32xbf16>, vector<32x32xbf16>, vector<8x32xf32> -> vector<8x32xf32>
    %c0_70 = arith.constant 0 : index
    %c0_71 = arith.constant 0 : index
    %131 = vector.load %arg21[%c0_70, %c0_71] : memref<1x32xf32, #tpu.memory_space<vmem>>, vector<1x32xf32>
    %132 = vector.broadcast %131 : vector<1x32xf32> to vector<8x32xf32>
    %133 = arith.addf %130, %132 : vector<8x32xf32>
    %cst_72 = arith.constant 0.000000e+00 : f32
    %134 = vector.broadcast %cst_72 : f32 to vector<8x32xf32>
    %135 = arith.maximumf %133, %134 : vector<8x32xf32>
    %136 = arith.truncf %135 : vector<8x32xf32> to vector<8x32xbf16>
    %c0_73 = arith.constant 0 : index
    %c0_74 = arith.constant 0 : index
    %137 = vector.load %arg22[%c0_73, %c0_74] : memref<32x32xbf16, #tpu.memory_space<vmem>>, vector<32x32xbf16>
    %cst_75 = arith.constant dense<0.000000e+00> : vector<8x32xf32>
    %138 = tpu.matmul %136, %137, %cst_75 {dimension_numbers = #tpu.dot_dimension_numbers<[1], [0], [0], [1], [0, 0, 1, 1], [], []>} : vector<8x32xbf16>, vector<32x32xbf16>, vector<8x32xf32> -> vector<8x32xf32>
    %c0_76 = arith.constant 0 : index
    %c0_77 = arith.constant 0 : index
    %139 = vector.load %arg23[%c0_76, %c0_77] : memref<1x32xf32, #tpu.memory_space<vmem>>, vector<1x32xf32>
    %140 = vector.broadcast %139 : vector<1x32xf32> to vector<8x32xf32>
    %141 = arith.addf %138, %140 : vector<8x32xf32>
    %cst_78 = arith.constant 0.000000e+00 : f32
    %142 = vector.broadcast %cst_78 : f32 to vector<8x32xf32>
    %143 = arith.maximumf %141, %142 : vector<8x32xf32>
    %144 = vector.broadcast %78 : vector<8x1xf32> to vector<8x32xf32>
    %145 = arith.mulf %143, %144 : vector<8x32xf32>
    %c0_79 = arith.constant 0 : index
    %c0_80 = arith.constant 0 : index
    %c0_81 = arith.constant 0 : index
    %146 = vector.load %arg5[%c0_79, %c0_80, %c0_81] : memref<1x1x1xf32, #tpu.memory_space<vmem>>, vector<1x1x1xf32>
    %147 = vector.shape_cast %146 : vector<1x1x1xf32> to vector<1x1xf32>
    %148 = arith.truncf %145 : vector<8x32xf32> to vector<8x32xbf16>
    %c0_82 = arith.constant 0 : index
    %c0_83 = arith.constant 0 : index
    %149 = vector.load %arg26[%c0_82, %c0_83] : memref<32x2xbf16, #tpu.memory_space<vmem>>, vector<32x2xbf16>
    %cst_84 = arith.constant dense<0.000000e+00> : vector<8x2xf32>
    %150 = tpu.matmul %148, %149, %cst_84 {dimension_numbers = #tpu.dot_dimension_numbers<[1], [0], [0], [1], [0, 0, 1, 1], [], []>} : vector<8x32xbf16>, vector<32x2xbf16>, vector<8x2xf32> -> vector<8x2xf32>
    %151 = vector.extract_strided_slice %150 {offsets = [0, 0], sizes = [8, 1], strides = [1, 1]} : vector<8x2xf32> to vector<8x1xf32>
    %152 = arith.truncf %151 : vector<8x1xf32> to vector<8x1xbf16>
    %cst_85 = arith.constant dense<0.000000e+00> : vector<8x1xf32>
    %153 = tpu.matmul %1, %152, %cst_85 {dimension_numbers = #tpu.dot_dimension_numbers<[1], [0], [0], [1], [0, 0, 1, 1], [], []>} : vector<8x8xbf16>, vector<8x1xbf16>, vector<8x1xf32> -> vector<8x1xf32>
    %154 = vector.extract_strided_slice %150 {offsets = [0, 1], sizes = [8, 1], strides = [1, 1]} : vector<8x2xf32> to vector<8x1xf32>
    %155 = arith.addf %153, %154 : vector<8x1xf32>
    %c0_86 = arith.constant 0 : index
    %c0_87 = arith.constant 0 : index
    %156 = vector.load %arg27[%c0_86, %c0_87] : memref<1x1xf32, #tpu.memory_space<vmem>>, vector<1x1xf32>
    %157 = vector.broadcast %156 : vector<1x1xf32> to vector<8x1xf32>
    %158 = arith.addf %155, %157 : vector<8x1xf32>
    %159 = math.tanh %158 : vector<8x1xf32>
    %cst_88 = arith.constant 0.000000e+00 : f32
    %160 = vector.shape_cast %159 : vector<8x1xf32> to vector<8x1xf32>
    %161 = vector.broadcast %160 : vector<8x1xf32> to vector<8x8xf32>
    %162 = vector.broadcast %cst_88 : f32 to vector<8x8xf32>
    %163 = arith.select %8, %161, %162 : vector<8x8xi1>, vector<8x8xf32>
    %cst_89 = arith.constant dense<0.000000e+00> : vector<8xf32>
    %164 = vector.multi_reduction <add>, %163, %cst_89 [0] : vector<8x8xf32> to vector<8xf32>
    %165 = vector.shape_cast %164 : vector<8xf32> to vector<1x8xf32>
    %166 = vector.broadcast %165 : vector<1x8xf32> to vector<8x8xf32>
    %167 = vector.broadcast %159 : vector<8x1xf32> to vector<8x8xf32>
    %168 = arith.cmpf ogt, %166, %167 : vector<8x8xf32>
    %169 = vector.broadcast %165 : vector<1x8xf32> to vector<8x8xf32>
    %170 = vector.broadcast %159 : vector<8x1xf32> to vector<8x8xf32>
    %171 = arith.cmpf oeq, %169, %170 : vector<8x8xf32>
    %172 = arith.andi %171, %9 : vector<8x8xi1>
    %173 = arith.ori %168, %172 : vector<8x8xi1>
    %cst_90 = arith.constant 1.000000e+00 : f32
    %cst_91 = arith.constant 0.000000e+00 : f32
    %174 = vector.broadcast %cst_90 : f32 to vector<8x8xf32>
    %175 = vector.broadcast %cst_91 : f32 to vector<8x8xf32>
    %176 = arith.select %173, %174, %175 : vector<8x8xi1>, vector<8x8xf32>
    %cst_92 = arith.constant dense<0.000000e+00> : vector<8x1xf32>
    %177 = tpu.matmul %176, %78, %cst_92 {dimension_numbers = #tpu.dot_dimension_numbers<[1], [0], [0], [1], [0, 0, 1, 1], [], []>} : vector<8x8xf32>, vector<8x1xf32>, vector<8x1xf32> -> vector<8x1xf32>
    %178 = vector.broadcast %147 : vector<1x1xf32> to vector<8x1xf32>
    %179 = arith.cmpf olt, %177, %178 : vector<8x1xf32>
    %cst_93 = arith.constant 1.000000e+00 : f32
    %cst_94 = arith.constant 0.000000e+00 : f32
    %180 = vector.broadcast %cst_93 : f32 to vector<8x1xf32>
    %181 = vector.broadcast %cst_94 : f32 to vector<8x1xf32>
    %182 = arith.select %179, %180, %181 : vector<8x1xi1>, vector<8x1xf32>
    %183 = arith.mulf %182, %78 : vector<8x1xf32>
    %184 = vector.broadcast %159 : vector<8x1xf32> to vector<8x32xf32>
    %185 = arith.mulf %145, %184 : vector<8x32xf32>
    %186 = vector.broadcast %183 : vector<8x1xf32> to vector<8x32xf32>
    %187 = arith.mulf %185, %186 : vector<8x32xf32>
    %cst_95 = arith.constant dense<0.000000e+00> : vector<32xf32>
    %188 = vector.multi_reduction <add>, %187, %cst_95 [0] : vector<8x32xf32> to vector<32xf32>
    %189 = vector.shape_cast %188 : vector<32xf32> to vector<1x32xf32>
    %c0_96 = arith.constant 0 : index
    %c0_97 = arith.constant 0 : index
    %c0_98 = arith.constant 0 : index
    %190 = vector.load %arg6[%c0_96, %c0_97, %c0_98] : memref<1x1x1xf32, #tpu.memory_space<vmem>>, vector<1x1x1xf32>
    %191 = vector.shape_cast %190 : vector<1x1x1xf32> to vector<1x1xf32>
    %192 = vector.broadcast %191 : vector<1x1xf32> to vector<1x32xf32>
    %193 = arith.mulf %189, %192 : vector<1x32xf32>
    %cst_99 = arith.constant 5.000000e-01 : f32
    %194 = vector.broadcast %cst_99 : f32 to vector<8x1xf32>
    %195 = arith.cmpf ogt, %183, %194 : vector<8x1xf32>
    %cst_100 = arith.constant -3.000000e+38 : f32
    %196 = vector.shape_cast %195 : vector<8x1xi1> to vector<8x1xi1>
    %197 = vector.broadcast %196 : vector<8x1xi1> to vector<8x32xi1>
    %198 = vector.broadcast %cst_100 : f32 to vector<8x32xf32>
    %199 = arith.select %197, %187, %198 : vector<8x32xi1>, vector<8x32xf32>
    %cst_101 = arith.constant dense<0xFF800000> : vector<32xf32>
    %200 = vector.multi_reduction <maximumf>, %199, %cst_101 [0] : vector<8x32xf32> to vector<32xf32>
    %201 = vector.shape_cast %200 : vector<32xf32> to vector<1x32xf32>
    %202 = tpu.iota {dimensions = array<i32: 0>} : vector<32x128xi32>
    %203 = tpu.iota {dimensions = array<i32: 1>} : vector<32x128xi32>
    %204 = arith.cmpi eq, %203, %202 : vector<32x128xi32>
    %cst_102 = arith.constant 1.000000e+00 : f32
    %cst_103 = arith.constant 0.000000e+00 : f32
    %205 = vector.broadcast %cst_102 : f32 to vector<32x128xf32>
    %206 = vector.broadcast %cst_103 : f32 to vector<32x128xf32>
    %207 = arith.select %204, %205, %206 : vector<32x128xi1>, vector<32x128xf32>
    %cst_104 = arith.constant dense<0.000000e+00> : vector<1x128xf32>
    %208 = tpu.matmul %193, %207, %cst_104 {dimension_numbers = #tpu.dot_dimension_numbers<[1], [0], [0], [1], [0, 0, 1, 1], [], []>} : vector<1x32xf32>, vector<32x128xf32>, vector<1x128xf32> -> vector<1x128xf32>
    %c32_i32 = arith.constant 32 : i32
    %209 = vector.broadcast %c32_i32 : i32 to vector<32x128xi32>
    %210 = arith.addi %202, %209 : vector<32x128xi32>
    %211 = arith.cmpi eq, %203, %210 : vector<32x128xi32>
    %cst_105 = arith.constant 1.000000e+00 : f32
    %cst_106 = arith.constant 0.000000e+00 : f32
    %212 = vector.broadcast %cst_105 : f32 to vector<32x128xf32>
    %213 = vector.broadcast %cst_106 : f32 to vector<32x128xf32>
    %214 = arith.select %211, %212, %213 : vector<32x128xi1>, vector<32x128xf32>
    %cst_107 = arith.constant dense<0.000000e+00> : vector<1x128xf32>
    %215 = tpu.matmul %201, %214, %cst_107 {dimension_numbers = #tpu.dot_dimension_numbers<[1], [0], [0], [1], [0, 0, 1, 1], [], []>} : vector<1x32xf32>, vector<32x128xf32>, vector<1x128xf32> -> vector<1x128xf32>
    %216 = arith.addf %208, %215 : vector<1x128xf32>
    %217 = tpu.iota {dimensions = array<i32: 0>} : vector<8x128xi32>
    %c0_i32 = arith.constant 0 : i32
    %218 = vector.broadcast %c0_i32 : i32 to vector<8x128xi32>
    %219 = arith.cmpi eq, %217, %218 : vector<8x128xi32>
    %cst_108 = arith.constant 0.000000e+00 : f32
    %220 = vector.shape_cast %216 : vector<1x128xf32> to vector<1x128xf32>
    %221 = vector.broadcast %220 : vector<1x128xf32> to vector<8x128xf32>
    %222 = vector.broadcast %cst_108 : f32 to vector<8x128xf32>
    %223 = arith.select %219, %221, %222 : vector<8x128xi1>, vector<8x128xf32>
    %c0_109 = arith.constant 0 : index
    %c0_110 = arith.constant 0 : index
    %224 = vector.load %arg28[%c0_109, %c0_110] : memref<8x128xf32, #tpu.memory_space<vmem>>, vector<8x128xf32>
    tpu.vector_store %arg28[%c0_109, %c0_110], %223 {strides = array<i32>} : memref<8x128xf32, #tpu.memory_space<vmem>>, vector<8x128xf32>,
    return
  }
  func.func @transform_0(%arg0: i32) -> (i32, i32, i32) {
    %c0_i32 = arith.constant 0 : i32
    %c0_i32_0 = arith.constant 0 : i32
    %c0_i32_1 = arith.constant 0 : i32
    return %arg0, %c0_i32, %c0_i32_0 : i32, i32, i32
  }
  func.func @transform_1(%arg0: i32) -> (i32, i32, i32) {
    %c0_i32 = arith.constant 0 : i32
    %c0_i32_0 = arith.constant 0 : i32
    %c0_i32_1 = arith.constant 0 : i32
    return %arg0, %c0_i32, %c0_i32_0 : i32, i32, i32
  }
  func.func @transform_2(%arg0: i32) -> (i32, i32, i32) {
    %c0_i32 = arith.constant 0 : i32
    %c0_i32_0 = arith.constant 0 : i32
    %c0_i32_1 = arith.constant 0 : i32
    return %arg0, %c0_i32, %c0_i32_0 : i32, i32, i32
  }
  func.func @transform_3(%arg0: i32) -> (i32, i32, i32) {
    %c0_i32 = arith.constant 0 : i32
    %c0_i32_0 = arith.constant 0 : i32
    %c0_i32_1 = arith.constant 0 : i32
    return %arg0, %c0_i32, %c0_i32_0 : i32, i32, i32
  }
  func.func @transform_4(%arg0: i32) -> (i32, i32, i32) {
    %c0_i32 = arith.constant 0 : i32
    %c0_i32_0 = arith.constant 0 : i32
    %c0_i32_1 = arith.constant 0 : i32
    return %arg0, %c0_i32, %c0_i32_0 : i32, i32, i32
  }
  func.func @transform_5(%arg0: i32) -> (i32, i32, i32) {
    %c0_i32 = arith.constant 0 : i32
    %c0_i32_0 = arith.constant 0 : i32
    %c0_i32_1 = arith.constant 0 : i32
    return %arg0, %c0_i32, %c0_i32_0 : i32, i32, i32
  }
  func.func @transform_6(%arg0: i32) -> (i32, i32) {
    %c0_i32 = arith.constant 0 : i32
    %c0_i32_0 = arith.constant 0 : i32
    %c0_i32_1 = arith.constant 0 : i32
    return %c0_i32, %c0_i32_0 : i32, i32
  }
  func.func @transform_7(%arg0: i32) -> (i32, i32) {
    %c0_i32 = arith.constant 0 : i32
    %c0_i32_0 = arith.constant 0 : i32
    %c0_i32_1 = arith.constant 0 : i32
    return %c0_i32, %c0_i32_0 : i32, i32
  }
  func.func @transform_8(%arg0: i32) -> (i32, i32) {
    %c0_i32 = arith.constant 0 : i32
    %c0_i32_0 = arith.constant 0 : i32
    %c0_i32_1 = arith.constant 0 : i32
    return %c0_i32, %c0_i32_0 : i32, i32
  }
  func.func @transform_9(%arg0: i32) -> (i32, i32) {
    %c0_i32 = arith.constant 0 : i32
    %c0_i32_0 = arith.constant 0 : i32
    %c0_i32_1 = arith.constant 0 : i32
    return %c0_i32, %c0_i32_0 : i32, i32
  }
  func.func @transform_10(%arg0: i32) -> (i32, i32) {
    %c0_i32 = arith.constant 0 : i32
    %c0_i32_0 = arith.constant 0 : i32
    %c0_i32_1 = arith.constant 0 : i32
    return %c0_i32, %c0_i32_0 : i32, i32
  }
  func.func @transform_11(%arg0: i32) -> (i32, i32) {
    %c0_i32 = arith.constant 0 : i32
    %c0_i32_0 = arith.constant 0 : i32
    %c0_i32_1 = arith.constant 0 : i32
    return %c0_i32, %c0_i32_0 : i32, i32
  }
  func.func @transform_12(%arg0: i32) -> (i32, i32) {
    %c0_i32 = arith.constant 0 : i32
    %c0_i32_0 = arith.constant 0 : i32
    %c0_i32_1 = arith.constant 0 : i32
    return %c0_i32, %c0_i32_0 : i32, i32
  }
  func.func @transform_13(%arg0: i32) -> (i32, i32) {
    %c0_i32 = arith.constant 0 : i32
    %c0_i32_0 = arith.constant 0 : i32
    %c0_i32_1 = arith.constant 0 : i32
    return %c0_i32, %c0_i32_0 : i32, i32
  }
  func.func @transform_14(%arg0: i32) -> (i32, i32) {
    %c0_i32 = arith.constant 0 : i32
    %c0_i32_0 = arith.constant 0 : i32
    %c0_i32_1 = arith.constant 0 : i32
    return %c0_i32, %c0_i32_0 : i32, i32
  }
  func.func @transform_15(%arg0: i32) -> (i32, i32) {
    %c0_i32 = arith.constant 0 : i32
    %c0_i32_0 = arith.constant 0 : i32
    %c0_i32_1 = arith.constant 0 : i32
    return %c0_i32, %c0_i32_0 : i32, i32
  }
  func.func @transform_16(%arg0: i32) -> (i32, i32) {
    %c0_i32 = arith.constant 0 : i32
    %c0_i32_0 = arith.constant 0 : i32
    %c0_i32_1 = arith.constant 0 : i32
    return %c0_i32, %c0_i32_0 : i32, i32
  }
  func.func @transform_17(%arg0: i32) -> (i32, i32) {
    %c0_i32 = arith.constant 0 : i32
    %c0_i32_0 = arith.constant 0 : i32
    %c0_i32_1 = arith.constant 0 : i32
    return %c0_i32, %c0_i32_0 : i32, i32
  }
  func.func @transform_18(%arg0: i32) -> (i32, i32) {
    %c0_i32 = arith.constant 0 : i32
    %c0_i32_0 = arith.constant 0 : i32
    %c0_i32_1 = arith.constant 0 : i32
    return %c0_i32, %c0_i32_0 : i32, i32
  }
  func.func @transform_19(%arg0: i32) -> (i32, i32) {
    %c0_i32 = arith.constant 0 : i32
    %c0_i32_0 = arith.constant 0 : i32
    %c0_i32_1 = arith.constant 0 : i32
    return %c0_i32, %c0_i32_0 : i32, i32
  }
  func.func @transform_20(%arg0: i32) -> (i32, i32) {
    %c0_i32 = arith.constant 0 : i32
    %c0_i32_0 = arith.constant 0 : i32
    %c0_i32_1 = arith.constant 0 : i32
    return %c0_i32, %c0_i32_0 : i32, i32
  }
  func.func @transform_21(%arg0: i32) -> (i32, i32) {
    %c0_i32 = arith.constant 0 : i32
    %c0_i32_0 = arith.constant 0 : i32
    %c0_i32_1 = arith.constant 0 : i32
    return %c0_i32, %c0_i32_0 : i32, i32
  }
  func.func @transform_22(%arg0: i32) -> (i32, i32) {
    %c0_i32 = arith.constant 0 : i32
    %c0_i32_0 = arith.constant 0 : i32
    %c0_i32_1 = arith.constant 0 : i32
    return %c0_i32, %c0_i32_0 : i32, i32
  }
  func.func @transform_23(%arg0: i32) -> (i32, i32) {
    %c0_i32 = arith.constant 0 : i32
    %c0_i32_0 = arith.constant 0 : i32
    %c0_i32_1 = arith.constant 0 : i32
    return %c0_i32, %c0_i32_0 : i32, i32
  }
  func.func @transform_24(%arg0: i32) -> (i32, i32) {
    %c0_i32 = arith.constant 0 : i32
    %c0_i32_0 = arith.constant 0 : i32
    %c0_i32_1 = arith.constant 0 : i32
    return %c0_i32, %c0_i32_0 : i32, i32
  }
  func.func @transform_25(%arg0: i32) -> (i32, i32) {
    %c0_i32 = arith.constant 0 : i32
    %c0_i32_0 = arith.constant 0 : i32
    %c0_i32_1 = arith.constant 0 : i32
    return %c0_i32, %c0_i32_0 : i32, i32
  }
  func.func @transform_26(%arg0: i32) -> (i32, i32) {
    %c0_i32 = arith.constant 0 : i32
    %c0_i32_0 = arith.constant 0 : i32
    %c0_i32_1 = arith.constant 0 : i32
    return %c0_i32, %c0_i32_0 : i32, i32
  }
  func.func @transform_27(%arg0: i32) -> (i32, i32) {
    %c0_i32 = arith.constant 0 : i32
    %c0_i32_0 = arith.constant 0 : i32
    return %arg0, %c0_i32 : i32, i32
  }
}

</mosaic_0001>

<llo_original>
// kernel: gin_forward.1
$region0: #{gin_forward.1}
  #allocation0 [shape = 'u32[]', space=smem, size = 0x4, offset = 0x4, fixed_abs, tag = 'smem constant byte address 0x4 - core index']
  #allocation1 [shape = 'u32[144,128]{1,0:T(1,128)}', space=vmem, size = 0x12000, scoped, tag = 'internal scratch']
  #allocation2 [shape = 'f32[1,1]{1,0:T(1,128)S(1)}', space=vmem, size = 0x200, scoped, tag = 'scoped memory for gin_forward.1']
  #allocation3 [shape = 'f32[1,1]{1,0:T(1,128)S(1)}', space=vmem, size = 0x200, scoped, tag = 'scoped memory for gin_forward.1']
  %s0 = inlined_call_operand.vmem [shape: bf16[2,8,8], index: 0, kind: input, shape index: {}]
  %s1 = inlined_call_operand.vmem [shape: f32[2,8,8], index: 1, kind: input, shape index: {}]
  %s2 = inlined_call_operand.vmem [shape: f32[2,8,1], index: 2, kind: input, shape index: {}]
  %s3 = inlined_call_operand.vmem [shape: f32[2,1,1], index: 3, kind: input, shape index: {}]
  %s4 = inlined_call_operand.vmem [shape: f32[2,1,1], index: 4, kind: input, shape index: {}]
  %s5 = inlined_call_operand.vmem [shape: f32[2,1,1], index: 5, kind: input, shape index: {}]
  %s6 = inlined_call_operand.vmem [shape: bf16[8,32], index: 6, kind: input, shape index: {}]
  %s7 = inlined_call_operand.vmem [shape: f32[1,32], index: 7, kind: input, shape index: {}]
  %s8 = inlined_call_operand.vmem [shape: f32[1,32], index: 8, kind: input, shape index: {}]
  %s9 = inlined_call_operand.vmem [shape: bf16[32,32], index: 9, kind: input, shape index: {}]
  %s10 = inlined_call_operand.vmem [shape: f32[1,32], index: 10, kind: input, shape index: {}]
  %s11 = inlined_call_operand.vmem [shape: bf16[32,32], index: 11, kind: input, shape index: {}]
  %s12 = inlined_call_operand.vmem [shape: f32[1,32], index: 12, kind: input, shape index: {}]
  %s13 = inlined_call_operand.vmem [shape: bf16[32,32], index: 13, kind: input, shape index: {}]
  %s14 = inlined_call_operand.vmem [shape: f32[1,32], index: 14, kind: input, shape index: {}]
  %s15 = inlined_call_operand.vmem [shape: bf16[32,32], index: 15, kind: input, shape index: {}]
  %s16 = inlined_call_operand.vmem [shape: f32[1,32], index: 16, kind: input, shape index: {}]
  %s17 = inlined_call_operand.vmem [shape: bf16[32,32], index: 17, kind: input, shape index: {}]
  %s18 = inlined_call_operand.vmem [shape: f32[1,32], index: 18, kind: input, shape index: {}]
  %s19 = inlined_call_operand.vmem [shape: bf16[32,32], index: 19, kind: input, shape index: {}]
  %s20 = inlined_call_operand.vmem [shape: f32[1,32], index: 20, kind: input, shape index: {}]
  %s21 = inlined_call_operand.vmem [shape: bf16[32,32], index: 21, kind: input, shape index: {}]
  %s22 = inlined_call_operand.vmem [shape: f32[1,32], index: 22, kind: input, shape index: {}]
  %s23 = inlined_call_operand.vmem [shape: bf16[32,2], index: 23, kind: input, shape index: {}]
  %s24 = inlined_call_operand.<no memory space> [shape: f32[1,1], index: 24, kind: input, shape index: {}]
  %s25 = inlined_call_operand.vmem [shape: bf16[32,2], index: 25, kind: input, shape index: {}]
  %s26 = inlined_call_operand.<no memory space> [shape: f32[1,1], index: 26, kind: input, shape index: {}]
  %s27 = inlined_call_operand.vmem [shape: f32[16,128], index: 27, kind: output, shape index: {}]
  %s28 = sld [smem:[#allocation0]]
  $region141: #{gin_forward.1} parent=0
    _
  %s30 = ssub.s32 1, %s28
  %s31 = scalar_select 0, %s30, %s28
  %v32 = vstv %s24
  %33 = vst [vmem:[#allocation2] sm:$0x1] %v32
  %v34 = vstv %s26
  %35 = vst [vmem:[#allocation3] sm:$0x1] %v34
  loop: start=0, step=1, limit=4
  $region2: #{gin_forward.1} parent=0 // loop_pre_header
    _
  $region3: #{gin_forward.1} parent=0 // loop_header
    %s37 = sphi 0, %s41
    %p38 = scmp.ge.s32.totalorder %s37, 4
    %s47 = sphi 0, %s49
    %s50 = sphi 0, %s47
    %s51 = sphi 0, %s50
    %s67 = sphi 0, %s51
    %s73 = sphi 0, %s75
    %s76 = sphi 0, %s73
    %s77 = sphi 0, %s76
    %s93 = sphi 0, %s77
    %s99 = sphi 0, %s101
    %s102 = sphi 0, %s99
    %s103 = sphi 0, %s102
    %s119 = sphi 0, %s103
    %s125 = sphi 0, %s127
    %s128 = sphi 0, %s125
    %s129 = sphi 0, %s128
    %s145 = sphi 0, %s129
    %s151 = sphi 0, %s153
    %s154 = sphi 0, %s151
    %s155 = sphi 0, %s154
    %s171 = sphi 0, %s155
    %s177 = sphi 0, %s179
    %s180 = sphi 0, %s177
    %s181 = sphi 0, %s180
    %s197 = sphi 0, %s181
    %s201 = sphi 0, %s201
    %s203 = sphi 0, %s201
    %s204 = sphi 0, %s203
    %s218 = sphi 0, %s204
    %s222 = sphi 0, %s222
    %s224 = sphi 0, %s222
    %s225 = sphi 0, %s224
    %s239 = sphi 0, %s225
    %s243 = sphi 0, %s243
    %s245 = sphi 0, %s243
    %s246 = sphi 0, %s245
    %s260 = sphi 0, %s246
    %s264 = sphi 0, %s264
    %s266 = sphi 0, %s264
    %s267 = sphi 0, %s266
    %s281 = sphi 0, %s267
    %s285 = sphi 0, %s285
    %s287 = sphi 0, %s285
    %s288 = sphi 0, %s287
    %s302 = sphi 0, %s288
    %s306 = sphi 0, %s306
    %s308 = sphi 0, %s306
    %s309 = sphi 0, %s308
    %s323 = sphi 0, %s309
    %s327 = sphi 0, %s327
    %s329 = sphi 0, %s327
    %s330 = sphi 0, %s329
    %s344 = sphi 0, %s330
    %s348 = sphi 0, %s348
    %s350 = sphi 0, %s348
    %s351 = sphi 0, %s350
    %s365 = sphi 0, %s351
    %s369 = sphi 0, %s369
    %s371 = sphi 0, %s369
    %s372 = sphi 0, %s371
    %s386 = sphi 0, %s372
    %s390 = sphi 0, %s390
    %s392 = sphi 0, %s390
    %s393 = sphi 0, %s392
    %s407 = sphi 0, %s393
    %s411 = sphi 0, %s411
    %s413 = sphi 0, %s411
    %s414 = sphi 0, %s413
    %s428 = sphi 0, %s414
    %s432 = sphi 0, %s432
    %s434 = sphi 0, %s432
    %s435 = sphi 0, %s434
    %s449 = sphi 0, %s435
    %s453 = sphi 0, %s453
    %s455 = sphi 0, %s453
    %s456 = sphi 0, %s455
    %s470 = sphi 0, %s456
    %s474 = sphi 0, %s474
    %s476 = sphi 0, %s474
    %s477 = sphi 0, %s476
    %s491 = sphi 0, %s477
    %s495 = sphi 0, %s495
    %s497 = sphi 0, %s495
    %s498 = sphi 0, %s497
    %s512 = sphi 0, %s498
    %s516 = sphi 0, %s516
    %s518 = sphi 0, %s516
    %s519 = sphi 0, %s518
    %s533 = sphi 0, %s519
    %s537 = sphi 0, %s537
    %s539 = sphi 0, %s537
    %s540 = sphi 0, %s539
    %s554 = sphi 0, %s540
    %s558 = sphi 0, %s558
    %s560 = sphi 0, %s558
    %s561 = sphi 0, %s560
    %s575 = sphi 0, %s561
    %s579 = sphi 0, %s579
    %s581 = sphi 0, %s579
    %s582 = sphi 0, %s581
    %s596 = sphi 0, %s582
    %s600 = sphi 0, %s600
    %s602 = sphi 0, %s600
    %s603 = sphi 0, %s602
    %s617 = sphi 0, %s603
    %s621 = sphi 0, %s621
    %s623 = sphi 0, %s621
    %s624 = sphi 0, %s623
    %s638 = sphi 0, %s624
    %s644 = sphi 0, %s646
    %s647 = sphi 0, %s644
    %s648 = sphi 0, %s647
    %s664 = sphi 0, %s648
  $region4: #{gin_forward.1} parent=0 // loop_header_branch
    %40 = sbr.rel (%p38) target = $region8
  $region5: #{gin_forward.1} parent=0 // loop_body
    %s42 = ssub.s32 %s37, 1
    %s43 = ssub.s32 %s37, 2
    %s44 = sadd.s32 %s37, 1
    %s45 = ssub.s32 %s37, %s44
    %p46 = scmp.eq.s32.totalorder %s45, 0
    %s48 = sadd.s32 %s47, 1
    %s49 = scalar_select %p46, %s47, %s48
    %p52 = pneg %p46
    %p53 = scmp.eq.s32.totalorder %s37, 1
    %p54 = por %p52, %p53
    %p55 = scmp.ne.s32.totalorder %s47, %s50
    %p56 = scmp.eq.s32.totalorder %s37, 0
    %p57 = por %p55, %p56
    %p58 = scmp.ne.s32.totalorder %s47, %s50
    %p59 = scmp.eq.s32.totalorder %s42, 1
    %p60 = por %p58, %p59
    %p61 = scmp.ne.s32.totalorder %s50, %s51
    %p62 = scmp.eq.s32.totalorder %s42, 0
    %p63 = por %p61, %p62
    %p64 = scmp.ne.s32.totalorder %s50, %s51
    %p65 = scmp.eq.s32.totalorder %s43, 1
    %p66 = por %p64, %p65
    %p68 = scmp.ne.s32.totalorder %s51, %s67
    %p69 = scmp.eq.s32.totalorder %s43, 0
    %p70 = por %p68, %p69
    %s71 = ssub.s32 %s37, %s44
    %p72 = scmp.eq.s32.totalorder %s71, 0
    %s74 = sadd.s32 %s73, 1
    %s75 = scalar_select %p72, %s73, %s74
    %p78 = pneg %p72
    %p79 = scmp.eq.s32.totalorder %s37, 1
    %p80 = por %p78, %p79
    %p81 = scmp.ne.s32.totalorder %s73, %s76
    %p82 = scmp.eq.s32.totalorder %s37, 0
    %p83 = por %p81, %p82
    %p84 = scmp.ne.s32.totalorder %s73, %s76
    %p85 = scmp.eq.s32.totalorder %s42, 1
    %p86 = por %p84, %p85
    %p87 = scmp.ne.s32.totalorder %s76, %s77
    %p88 = scmp.eq.s32.totalorder %s42, 0
    %p89 = por %p87, %p88
    %p90 = scmp.ne.s32.totalorder %s76, %s77
    %p91 = scmp.eq.s32.totalorder %s43, 1
    %p92 = por %p90, %p91
    %p94 = scmp.ne.s32.totalorder %s77, %s93
    %p95 = scmp.eq.s32.totalorder %s43, 0
    %p96 = por %p94, %p95
    %s97 = ssub.s32 %s37, %s44
    %p98 = scmp.eq.s32.totalorder %s97, 0
    %s100 = sadd.s32 %s99, 1
    %s101 = scalar_select %p98, %s99, %s100
    %p104 = pneg %p98
    %p105 = scmp.eq.s32.totalorder %s37, 1
    %p106 = por %p104, %p105
    %p107 = scmp.ne.s32.totalorder %s99, %s102
    %p108 = scmp.eq.s32.totalorder %s37, 0
    %p109 = por %p107, %p108
    %p110 = scmp.ne.s32.totalorder %s99, %s102
    %p111 = scmp.eq.s32.totalorder %s42, 1
    %p112 = por %p110, %p111
    %p113 = scmp.ne.s32.totalorder %s102, %s103
    %p114 = scmp.eq.s32.totalorder %s42, 0
    %p115 = por %p113, %p114
    %p116 = scmp.ne.s32.totalorder %s102, %s103
    %p117 = scmp.eq.s32.totalorder %s43, 1
    %p118 = por %p116, %p117
    %p120 = scmp.ne.s32.totalorder %s103, %s119
    %p121 = scmp.eq.s32.totalorder %s43, 0
    %p122 = por %p120, %p121
    %s123 = ssub.s32 %s37, %s44
    %p124 = scmp.eq.s32.totalorder %s123, 0
    %s126 = sadd.s32 %s125, 1
    %s127 = scalar_select %p124, %s125, %s126
    %p130 = pneg %p124
    %p131 = scmp.eq.s32.totalorder %s37, 1
    %p132 = por %p130, %p131
    %p133 = scmp.ne.s32.totalorder %s125, %s128
    %p134 = scmp.eq.s32.totalorder %s37, 0
    %p135 = por %p133, %p134
    %p136 = scmp.ne.s32.totalorder %s125, %s128
    %p137 = scmp.eq.s32.totalorder %s42, 1
    %p138 = por %p136, %p137
    %p139 = scmp.ne.s32.totalorder %s128, %s129
    %p140 = scmp.eq.s32.totalorder %s42, 0
    %p141 = por %p139, %p140
    %p142 = scmp.ne.s32.totalorder %s128, %s129
    %p143 = scmp.eq.s32.totalorder %s43, 1
    %p144 = por %p142, %p143
    %p146 = scmp.ne.s32.totalorder %s129, %s145
    %p147 = scmp.eq.s32.totalorder %s43, 0
    %p148 = por %p146, %p147
    %s149 = ssub.s32 %s37, %s44
    %p150 = scmp.eq.s32.totalorder %s149, 0
    %s152 = sadd.s32 %s151, 1
    %s153 = scalar_select %p150, %s151, %s152
    %p156 = pneg %p150
    %p157 = scmp.eq.s32.totalorder %s37, 1
    %p158 = por %p156, %p157
    %p159 = scmp.ne.s32.totalorder %s151, %s154
    %p160 = scmp.eq.s32.totalorder %s37, 0
    %p161 = por %p159, %p160
    %p162 = scmp.ne.s32.totalorder %s151, %s154
    %p163 = scmp.eq.s32.totalorder %s42, 1
    %p164 = por %p162, %p163
    %p165 = scmp.ne.s32.totalorder %s154, %s155
    %p166 = scmp.eq.s32.totalorder %s42, 0
    %p167 = por %p165, %p166
    %p168 = scmp.ne.s32.totalorder %s154, %s155
    %p169 = scmp.eq.s32.totalorder %s43, 1
    %p170 = por %p168, %p169
    %p172 = scmp.ne.s32.totalorder %s155, %s171
    %p173 = scmp.eq.s32.totalorder %s43, 0
    %p174 = por %p172, %p173
    %s175 = ssub.s32 %s37, %s44
    %p176 = scmp.eq.s32.totalorder %s175, 0
    %s178 = sadd.s32 %s177, 1
    %s179 = scalar_select %p176, %s177, %s178
    %p182 = pneg %p176
    %p183 = scmp.eq.s32.totalorder %s37, 1
    %p184 = por %p182, %p183
    %p185 = scmp.ne.s32.totalorder %s177, %s180
    %p186 = scmp.eq.s32.totalorder %s37, 0
    %p187 = por %p185, %p186
    %p188 = scmp.ne.s32.totalorder %s177, %s180
    %p189 = scmp.eq.s32.totalorder %s42, 1
    %p190 = por %p188, %p189
    %p191 = scmp.ne.s32.totalorder %s180, %s181
    %p192 = scmp.eq.s32.totalorder %s42, 0
    %p193 = por %p191, %p192
    %p194 = scmp.ne.s32.totalorder %s180, %s181
    %p195 = scmp.eq.s32.totalorder %s43, 1
    %p196 = por %p194, %p195
    %p198 = scmp.ne.s32.totalorder %s181, %s197
    %p199 = scmp.eq.s32.totalorder %s43, 0
    %p200 = por %p198, %p199
    %s202 = sadd.s32 %s201, 1
    %p205 = scmp.eq.s32.totalorder %s37, 1
    %p206 = scmp.ne.s32.totalorder %s201, %s203
    %p207 = scmp.eq.s32.totalorder %s37, 0
    %p208 = por %p206, %p207
    %p209 = scmp.ne.s32.totalorder %s201, %s203
    %p210 = scmp.eq.s32.totalorder %s42, 1
    %p211 = por %p209, %p210
    %p212 = scmp.ne.s32.totalorder %s203, %s204
    %p213 = scmp.eq.s32.totalorder %s42, 0
    %p214 = por %p212, %p213
    %p215 = scmp.ne.s32.totalorder %s203, %s204
    %p216 = scmp.eq.s32.totalorder %s43, 1
    %p217 = por %p215, %p216
    %p219 = scmp.ne.s32.totalorder %s204, %s218
    %p220 = scmp.eq.s32.totalorder %s43, 0
    %p221 = por %p219, %p220
    %s223 = sadd.s32 %s222, 1
    %p226 = scmp.eq.s32.totalorder %s37, 1
    %p227 = scmp.ne.s32.totalorder %s222, %s224
    %p228 = scmp.eq.s32.totalorder %s37, 0
    %p229 = por %p227, %p228
    %p230 = scmp.ne.s32.totalorder %s222, %s224
    %p231 = scmp.eq.s32.totalorder %s42, 1
    %p232 = por %p230, %p231
    %p233 = scmp.ne.s32.totalorder %s224, %s225
    %p234 = scmp.eq.s32.totalorder %s42, 0
    %p235 = por %p233, %p234
    %p236 = scmp.ne.s32.totalorder %s224, %s225
    %p237 = scmp.eq.s32.totalorder %s43, 1
    %p238 = por %p236, %p237
    %p240 = scmp.ne.s32.totalorder %s225, %s239
    %p241 = scmp.eq.s32.totalorder %s43, 0
    %p242 = por %p240, %p241
    %s244 = sadd.s32 %s243, 1
    %p247 = scmp.eq.s32.totalorder %s37, 1
    %p248 = scmp.ne.s32.totalorder %s243, %s245
    %p249 = scmp.eq.s32.totalorder %s37, 0
    %p250 = por %p248, %p249
    %p251 = scmp.ne.s32.totalorder %s243, %s245
    %p252 = scmp.eq.s32.totalorder %s42, 1
    %p253 = por %p251, %p252
    %p254 = scmp.ne.s32.totalorder %s245, %s246
    %p255 = scmp.eq.s32.totalorder %s42, 0
    %p256 = por %p254, %p255
    %p257 = scmp.ne.s32.totalorder %s245, %s246
    %p258 = scmp.eq.s32.totalorder %s43, 1
    %p259 = por %p257, %p258
    %p261 = scmp.ne.s32.totalorder %s246, %s260
    %p262 = scmp.eq.s32.totalorder %s43, 0
    %p263 = por %p261, %p262
    %s265 = sadd.s32 %s264, 1
    %p268 = scmp.eq.s32.totalorder %s37, 1
    %p269 = scmp.ne.s32.totalorder %s264, %s266
    %p270 = scmp.eq.s32.totalorder %s37, 0
    %p271 = por %p269, %p270
    %p272 = scmp.ne.s32.totalorder %s264, %s266
    %p273 = scmp.eq.s32.totalorder %s42, 1
    %p274 = por %p272, %p273
    %p275 = scmp.ne.s32.totalorder %s266, %s267
    %p276 = scmp.eq.s32.totalorder %s42, 0
    %p277 = por %p275, %p276
    %p278 = scmp.ne.s32.totalorder %s266, %s267
    %p279 = scmp.eq.s32.totalorder %s43, 1
    %p280 = por %p278, %p279
    %p282 = scmp.ne.s32.totalorder %s267, %s281
    %p283 = scmp.eq.s32.totalorder %s43, 0
    %p284 = por %p282, %p283
    %s286 = sadd.s32 %s285, 1
    %p289 = scmp.eq.s32.totalorder %s37, 1
    %p290 = scmp.ne.s32.totalorder %s285, %s287
    %p291 = scmp.eq.s32.totalorder %s37, 0
    %p292 = por %p290, %p291
    %p293 = scmp.ne.s32.totalorder %s285, %s287
    %p294 = scmp.eq.s32.totalorder %s42, 1
    %p295 = por %p293, %p294
    %p296 = scmp.ne.s32.totalorder %s287, %s288
    %p297 = scmp.eq.s32.totalorder %s42, 0
    %p298 = por %p296, %p297
    %p299 = scmp.ne.s32.totalorder %s287, %s288
    %p300 = scmp.eq.s32.totalorder %s43, 1
    %p301 = por %p299, %p300
    %p303 = scmp.ne.s32.totalorder %s288, %s302
    %p304 = scmp.eq.s32.totalorder %s43, 0
    %p305 = por %p303, %p304
    %s307 = sadd.s32 %s306, 1
    %p310 = scmp.eq.s32.totalorder %s37, 1
    %p311 = scmp.ne.s32.totalorder %s306, %s308
    %p312 = scmp.eq.s32.totalorder %s37, 0
    %p313 = por %p311, %p312
    %p314 = scmp.ne.s32.totalorder %s306, %s308
    %p315 = scmp.eq.s32.totalorder %s42, 1
    %p316 = por %p314, %p315
    %p317 = scmp.ne.s32.totalorder %s308, %s309
    %p318 = scmp.eq.s32.totalorder %s42, 0
    %p319 = por %p317, %p318
    %p320 = scmp.ne.s32.totalorder %s308, %s309
    %p321 = scmp.eq.s32.totalorder %s43, 1
    %p322 = por %p320, %p321
    %p324 = scmp.ne.s32.totalorder %s309, %s323
    %p325 = scmp.eq.s32.totalorder %s43, 0
    %p326 = por %p324, %p325
    %s328 = sadd.s32 %s327, 1
    %p331 = scmp.eq.s32.totalorder %s37, 1
    %p332 = scmp.ne.s32.totalorder %s327, %s329
    %p333 = scmp.eq.s32.totalorder %s37, 0
    %p334 = por %p332, %p333
    %p335 = scmp.ne.s32.totalorder %s327, %s329
    %p336 = scmp.eq.s32.totalorder %s42, 1
    %p337 = por %p335, %p336
    %p338 = scmp.ne.s32.totalorder %s329, %s330
    %p339 = scmp.eq.s32.totalorder %s42, 0
    %p340 = por %p338, %p339
    %p341 = scmp.ne.s32.totalorder %s329, %s330
    %p342 = scmp.eq.s32.totalorder %s43, 1
    %p343 = por %p341, %p342
    %p345 = scmp.ne.s32.totalorder %s330, %s344
    %p346 = scmp.eq.s32.totalorder %s43, 0
    %p347 = por %p345, %p346
    %s349 = sadd.s32 %s348, 1
    %p352 = scmp.eq.s32.totalorder %s37, 1
    %p353 = scmp.ne.s32.totalorder %s348, %s350
    %p354 = scmp.eq.s32.totalorder %s37, 0
    %p355 = por %p353, %p354
    %p356 = scmp.ne.s32.totalorder %s348, %s350
    %p357 = scmp.eq.s32.totalorder %s42, 1
    %p358 = por %p356, %p357
    %p359 = scmp.ne.s32.totalorder %s350, %s351
    %p360 = scmp.eq.s32.totalorder %s42, 0
    %p361 = por %p359, %p360
    %p362 = scmp.ne.s32.totalorder %s350, %s351
    %p363 = scmp.eq.s32.totalorder %s43, 1
    %p364 = por %p362, %p363
    %p366 = scmp.ne.s32.totalorder %s351, %s365
    %p367 = scmp.eq.s32.totalorder %s43, 0
    %p368 = por %p366, %p367
    %s370 = sadd.s32 %s369, 1
    %p373 = scmp.eq.s32.totalorder %s37, 1
    %p374 = scmp.ne.s32.totalorder %s369, %s371
    %p375 = scmp.eq.s32.totalorder %s37, 0
    %p376 = por %p374, %p375
    %p377 = scmp.ne.s32.totalorder %s369, %s371
    %p378 = scmp.eq.s32.totalorder %s42, 1
    %p379 = por %p377, %p378
    %p380 = scmp.ne.s32.totalorder %s371, %s372
    %p381 = scmp.eq.s32.totalorder %s42, 0
    %p382 = por %p380, %p381
    %p383 = scmp.ne.s32.totalorder %s371, %s372
    %p384 = scmp.eq.s32.totalorder %s43, 1
    %p385 = por %p383, %p384
    %p387 = scmp.ne.s32.totalorder %s372, %s386
    %p388 = scmp.eq.s32.totalorder %s43, 0
    %p389 = por %p387, %p388
    %s391 = sadd.s32 %s390, 1
    %p394 = scmp.eq.s32.totalorder %s37, 1
    %p395 = scmp.ne.s32.totalorder %s390, %s392
    %p396 = scmp.eq.s32.totalorder %s37, 0
    %p397 = por %p395, %p396
    %p398 = scmp.ne.s32.totalorder %s390, %s392
    %p399 = scmp.eq.s32.totalorder %s42, 1
    %p400 = por %p398, %p399
    %p401 = scmp.ne.s32.totalorder %s392, %s393
    %p402 = scmp.eq.s32.totalorder %s42, 0
    %p403 = por %p401, %p402
    %p404 = scmp.ne.s32.totalorder %s392, %s393
    %p405 = scmp.eq.s32.totalorder %s43, 1
    %p406 = por %p404, %p405
    %p408 = scmp.ne.s32.totalorder %s393, %s407
    %p409 = scmp.eq.s32.totalorder %s43, 0
    %p410 = por %p408, %p409
    %s412 = sadd.s32 %s411, 1
    %p415 = scmp.eq.s32.totalorder %s37, 1
    %p416 = scmp.ne.s32.totalorder %s411, %s413
    %p417 = scmp.eq.s32.totalorder %s37, 0
    %p418 = por %p416, %p417
    %p419 = scmp.ne.s32.totalorder %s411, %s413
    %p420 = scmp.eq.s32.totalorder %s42, 1
    %p421 = por %p419, %p420
    %p422 = scmp.ne.s32.totalorder %s413, %s414
    %p423 = scmp.eq.s32.totalorder %s42, 0
    %p424 = por %p422, %p423
    %p425 = scmp.ne.s32.totalorder %s413, %s414
    %p426 = scmp.eq.s32.totalorder %s43, 1
    %p427 = por %p425, %p426
    %p429 = scmp.ne.s32.totalorder %s414, %s428
    %p430 = scmp.eq.s32.totalorder %s43, 0
    %p431 = por %p429, %p430
    %s433 = sadd.s32 %s432, 1
    %p436 = scmp.eq.s32.totalorder %s37, 1
    %p437 = scmp.ne.s32.totalorder %s432, %s434
    %p438 = scmp.eq.s32.totalorder %s37, 0
    %p439 = por %p437, %p438
    %p440 = scmp.ne.s32.totalorder %s432, %s434
    %p441 = scmp.eq.s32.totalorder %s42, 1
    %p442 = por %p440, %p441
    %p443 = scmp.ne.s32.totalorder %s434, %s435
    %p444 = scmp.eq.s32.totalorder %s42, 0
    %p445 = por %p443, %p444
    %p446 = scmp.ne.s32.totalorder %s434, %s435
    %p447 = scmp.eq.s32.totalorder %s43, 1
    %p448 = por %p446, %p447
    %p450 = scmp.ne.s32.totalorder %s435, %s449
    %p451 = scmp.eq.s32.totalorder %s43, 0
    %p452 = por %p450, %p451
    %s454 = sadd.s32 %s453, 1
    %p457 = scmp.eq.s32.totalorder %s37, 1
    %p458 = scmp.ne.s32.totalorder %s453, %s455
    %p459 = scmp.eq.s32.totalorder %s37, 0
    %p460 = por %p458, %p459
    %p461 = scmp.ne.s32.totalorder %s453, %s455
    %p462 = scmp.eq.s32.totalorder %s42, 1
    %p463 = por %p461, %p462
    %p464 = scmp.ne.s32.totalorder %s455, %s456
    %p465 = scmp.eq.s32.totalorder %s42, 0
    %p466 = por %p464, %p465
    %p467 = scmp.ne.s32.totalorder %s455, %s456
    %p468 = scmp.eq.s32.totalorder %s43, 1
    %p469 = por %p467, %p468
    %p471 = scmp.ne.s32.totalorder %s456, %s470
    %p472 = scmp.eq.s32.totalorder %s43, 0
    %p473 = por %p471, %p472
    %s475 = sadd.s32 %s474, 1
    %p478 = scmp.eq.s32.totalorder %s37, 1
    %p479 = scmp.ne.s32.totalorder %s474, %s476
    %p480 = scmp.eq.s32.totalorder %s37, 0
    %p481 = por %p479, %p480
    %p482 = scmp.ne.s32.totalorder %s474, %s476
    %p483 = scmp.eq.s32.totalorder %s42, 1
    %p484 = por %p482, %p483
    %p485 = scmp.ne.s32.totalorder %s476, %s477
    %p486 = scmp.eq.s32.totalorder %s42, 0
    %p487 = por %p485, %p486
    %p488 = scmp.ne.s32.totalorder %s476, %s477
    %p489 = scmp.eq.s32.totalorder %s43, 1
    %p490 = por %p488, %p489
    %p492 = scmp.ne.s32.totalorder %s477, %s491
    %p493 = scmp.eq.s32.totalorder %s43, 0
    %p494 = por %p492, %p493
    %s496 = sadd.s32 %s495, 1
    %p499 = scmp.eq.s32.totalorder %s37, 1
    %p500 = scmp.ne.s32.totalorder %s495, %s497
    %p501 = scmp.eq.s32.totalorder %s37, 0
    %p502 = por %p500, %p501
    %p503 = scmp.ne.s32.totalorder %s495, %s497
    %p504 = scmp.eq.s32.totalorder %s42, 1
    %p505 = por %p503, %p504
    %p506 = scmp.ne.s32.totalorder %s497, %s498
    %p507 = scmp.eq.s32.totalorder %s42, 0
    %p508 = por %p506, %p507
    %p509 = scmp.ne.s32.totalorder %s497, %s498
    %p510 = scmp.eq.s32.totalorder %s43, 1
    %p511 = por %p509, %p510
    %p513 = scmp.ne.s32.totalorder %s498, %s512
    %p514 = scmp.eq.s32.totalorder %s43, 0
    %p515 = por %p513, %p514
    %s517 = sadd.s32 %s516, 1
    %p520 = scmp.eq.s32.totalorder %s37, 1
    %p521 = scmp.ne.s32.totalorder %s516, %s518
    %p522 = scmp.eq.s32.totalorder %s37, 0
    %p523 = por %p521, %p522
    %p524 = scmp.ne.s32.totalorder %s516, %s518
    %p525 = scmp.eq.s32.totalorder %s42, 1
    %p526 = por %p524, %p525
    %p527 = scmp.ne.s32.totalorder %s518, %s519
    %p528 = scmp.eq.s32.totalorder %s42, 0
    %p529 = por %p527, %p528
    %p530 = scmp.ne.s32.totalorder %s518, %s519
    %p531 = scmp.eq.s32.totalorder %s43, 1
    %p532 = por %p530, %p531
    %p534 = scmp.ne.s32.totalorder %s519, %s533
    %p535 = scmp.eq.s32.totalorder %s43, 0
    %p536 = por %p534, %p535
    %s538 = sadd.s32 %s537, 1
    %p541 = scmp.eq.s32.totalorder %s37, 1
    %p542 = scmp.ne.s32.totalorder %s537, %s539
    %p543 = scmp.eq.s32.totalorder %s37, 0
    %p544 = por %p542, %p543
    %p545 = scmp.ne.s32.totalorder %s537, %s539
    %p546 = scmp.eq.s32.totalorder %s42, 1
    %p547 = por %p545, %p546
    %p548 = scmp.ne.s32.totalorder %s539, %s540
    %p549 = scmp.eq.s32.totalorder %s42, 0
    %p550 = por %p548, %p549
    %p551 = scmp.ne.s32.totalorder %s539, %s540
    %p552 = scmp.eq.s32.totalorder %s43, 1
    %p553 = por %p551, %p552
    %p555 = scmp.ne.s32.totalorder %s540, %s554
    %p556 = scmp.eq.s32.totalorder %s43, 0
    %p557 = por %p555, %p556
    %s559 = sadd.s32 %s558, 1
    %p562 = scmp.eq.s32.totalorder %s37, 1
    %p563 = scmp.ne.s32.totalorder %s558, %s560
    %p564 = scmp.eq.s32.totalorder %s37, 0
    %p565 = por %p563, %p564
    %p566 = scmp.ne.s32.totalorder %s558, %s560
    %p567 = scmp.eq.s32.totalorder %s42, 1
    %p568 = por %p566, %p567
    %p569 = scmp.ne.s32.totalorder %s560, %s561
    %p570 = scmp.eq.s32.totalorder %s42, 0
    %p571 = por %p569, %p570
    %p572 = scmp.ne.s32.totalorder %s560, %s561
    %p573 = scmp.eq.s32.totalorder %s43, 1
    %p574 = por %p572, %p573
    %p576 = scmp.ne.s32.totalorder %s561, %s575
    %p577 = scmp.eq.s32.totalorder %s43, 0
    %p578 = por %p576, %p577
    %s580 = sadd.s32 %s579, 1
    %p583 = scmp.eq.s32.totalorder %s37, 1
    %p584 = scmp.ne.s32.totalorder %s579, %s581
    %p585 = scmp.eq.s32.totalorder %s37, 0
    %p586 = por %p584, %p585
    %p587 = scmp.ne.s32.totalorder %s579, %s581
    %p588 = scmp.eq.s32.totalorder %s42, 1
    %p589 = por %p587, %p588
    %p590 = scmp.ne.s32.totalorder %s581, %s582
    %p591 = scmp.eq.s32.totalorder %s42, 0
    %p592 = por %p590, %p591
    %p593 = scmp.ne.s32.totalorder %s581, %s582
    %p594 = scmp.eq.s32.totalorder %s43, 1
    %p595 = por %p593, %p594
    %p597 = scmp.ne.s32.totalorder %s582, %s596
    %p598 = scmp.eq.s32.totalorder %s43, 0
    %p599 = por %p597, %p598
    %s601 = sadd.s32 %s600, 1
    %p604 = scmp.eq.s32.totalorder %s37, 1
    %p605 = scmp.ne.s32.totalorder %s600, %s602
    %p606 = scmp.eq.s32.totalorder %s37, 0
    %p607 = por %p605, %p606
    %p608 = scmp.ne.s32.totalorder %s600, %s602
    %p609 = scmp.eq.s32.totalorder %s42, 1
    %p610 = por %p608, %p609
    %p611 = scmp.ne.s32.totalorder %s602, %s603
    %p612 = scmp.eq.s32.totalorder %s42, 0
    %p613 = por %p611, %p612
    %p614 = scmp.ne.s32.totalorder %s602, %s603
    %p615 = scmp.eq.s32.totalorder %s43, 1
    %p616 = por %p614, %p615
    %p618 = scmp.ne.s32.totalorder %s603, %s617
    %p619 = scmp.eq.s32.totalorder %s43, 0
    %p620 = por %p618, %p619
    %s622 = sadd.s32 %s621, 1
    %p625 = scmp.eq.s32.totalorder %s37, 1
    %p626 = scmp.ne.s32.totalorder %s621, %s623
    %p627 = scmp.eq.s32.totalorder %s37, 0
    %p628 = por %p626, %p627
    %p629 = scmp.ne.s32.totalorder %s621, %s623
    %p630 = scmp.eq.s32.totalorder %s42, 1
    %p631 = por %p629, %p630
    %p632 = scmp.ne.s32.totalorder %s623, %s624
    %p633 = scmp.eq.s32.totalorder %s42, 0
    %p634 = por %p632, %p633
    %p635 = scmp.ne.s32.totalorder %s623, %s624
    %p636 = scmp.eq.s32.totalorder %s43, 1
    %p637 = por %p635, %p636
    %p639 = scmp.ne.s32.totalorder %s624, %s638
    %p640 = scmp.eq.s32.totalorder %s43, 0
    %p641 = por %p639, %p640
    %s642 = ssub.s32 %s37, %s44
    %p643 = scmp.eq.s32.totalorder %s642, 0
    %s645 = sadd.s32 %s644, 1
    %s646 = scalar_select %p643, %s644, %s645
    %p649 = pneg %p643
    %p650 = scmp.eq.s32.totalorder %s37, 1
    %p651 = por %p649, %p650
    %p652 = scmp.ne.s32.totalorder %s644, %s647
    %p653 = scmp.eq.s32.totalorder %s37, 0
    %p654 = por %p652, %p653
    %p655 = scmp.ne.s32.totalorder %s644, %s647
    %p656 = scmp.eq.s32.totalorder %s42, 1
    %p657 = por %p655, %p656
    %p658 = scmp.ne.s32.totalorder %s647, %s648
    %p659 = scmp.eq.s32.totalorder %s42, 0
    %p660 = por %p658, %p659
    %p661 = scmp.ne.s32.totalorder %s647, %s648
    %p662 = scmp.eq.s32.totalorder %s43, 1
    %p663 = por %p661, %p662
    %p665 = scmp.ne.s32.totalorder %s648, %s664
    %p666 = scmp.eq.s32.totalorder %s43, 0
    %p667 = por %p665, %p666
    %p668 = scmp.le.s32.totalorder 1, %s37
    %p669 = scmp.lt.s32.totalorder %s37, 3
    %p670 = pnand %p668, %p669
    %p671 = pneg %p670
    // Predicated region
    $region9: #{gin_forward.1} parent=5 // pred_check
      _
    $region10: #{gin_forward.1} parent=5 // pred_check_branch
      %673 = sbr.rel (%p670) target = $region12
    $region11: #{gin_forward.1} parent=5 // pred_region
      %s674 = ssub.s32 %s37, 1
      // Predicated region
      $region13: #{gin_forward.1} parent=11 // pred_check
        %p675 = pneg %p214
      $region14: #{gin_forward.1} parent=11 // pred_check_branch
        %677 = sbr.rel (%p675) target = $region16
      $region15: #{gin_forward.1} parent=11 // pred_region
        _
      $region16: #{gin_forward.1} parent=11 // pred_fallthru
        _
      // Predicated region
      $region17: #{gin_forward.1} parent=11 // pred_check
        %p678 = pneg %p235
      $region18: #{gin_forward.1} parent=11 // pred_check_branch
        %680 = sbr.rel (%p678) target = $region20
      $region19: #{gin_forward.1} parent=11 // pred_region
        _
      $region20: #{gin_forward.1} parent=11 // pred_fallthru
        _
      // Predicated region
      $region21: #{gin_forward.1} parent=11 // pred_check
        %p681 = pneg %p256
      $region22: #{gin_forward.1} parent=11 // pred_check_branch
        %683 = sbr.rel (%p681) target = $region24
      $region23: #{gin_forward.1} parent=11 // pred_region
        _
      $region24: #{gin_forward.1} parent=11 // pred_fallthru
        _
      // Predicated region
      $region25: #{gin_forward.1} parent=11 // pred_check
        %p684 = pneg %p277
      $region26: #{gin_forward.1} parent=11 // pred_check_branch
        %686 = sbr.rel (%p684) target = $region28
      $region27: #{gin_forward.1} parent=11 // pred_region
        _
      $region28: #{gin_forward.1} parent=11 // pred_fallthru
        _
      // Predicated region
      $region29: #{gin_forward.1} parent=11 // pred_check
        %p687 = pneg %p298
      $region30: #{gin_forward.1} parent=11 // pred_check_branch
        %689 = sbr.rel (%p687) target = $region32
      $region31: #{gin_forward.1} parent=11 // pred_region
        _
      $region32: #{gin_forward.1} parent=11 // pred_fallthru
        _
      // Predicated region
      $region33: #{gin_forward.1} parent=11 // pred_check
        %p690 = pneg %p319
      $region34: #{gin_forward.1} parent=11 // pred_check_branch
        %692 = sbr.rel (%p690) target = $region36
      $region35: #{gin_forward.1} parent=11 // pred_region
        _
      $region36: #{gin_forward.1} parent=11 // pred_fallthru
        _
      // Predicated region
      $region37: #{gin_forward.1} parent=11 // pred_check
        %p693 = pneg %p340
      $region38: #{gin_forward.1} parent=11 // pred_check_branch
        %695 = sbr.rel (%p693) target = $region40
      $region39: #{gin_forward.1} parent=11 // pred_region
        _
      $region40: #{gin_forward.1} parent=11 // pred_fallthru
        _
      // Predicated region
      $region41: #{gin_forward.1} parent=11 // pred_check
        %p696 = pneg %p361
      $region42: #{gin_forward.1} parent=11 // pred_check_branch
        %698 = sbr.rel (%p696) target = $region44
      $region43: #{gin_forward.1} parent=11 // pred_region
        _
      $region44: #{gin_forward.1} parent=11 // pred_fallthru
        _
      // Predicated region
      $region45: #{gin_forward.1} parent=11 // pred_check
        %p699 = pneg %p382
      $region46: #{gin_forward.1} parent=11 // pred_check_branch
        %701 = sbr.rel (%p699) target = $region48
      $region47: #{gin_forward.1} parent=11 // pred_region
        _
      $region48: #{gin_forward.1} parent=11 // pred_fallthru
        _
      // Predicated region
      $region49: #{gin_forward.1} parent=11 // pred_check
        %p702 = pneg %p403
      $region50: #{gin_forward.1} parent=11 // pred_check_branch
        %704 = sbr.rel (%p702) target = $region52
      $region51: #{gin_forward.1} parent=11 // pred_region
        _
      $region52: #{gin_forward.1} parent=11 // pred_fallthru
        _
      // Predicated region
      $region53: #{gin_forward.1} parent=11 // pred_check
        %p705 = pneg %p424
      $region54: #{gin_forward.1} parent=11 // pred_check_branch
        %707 = sbr.rel (%p705) target = $region56
      $region55: #{gin_forward.1} parent=11 // pred_region
        _
      $region56: #{gin_forward.1} parent=11 // pred_fallthru
        _
      // Predicated region
      $region57: #{gin_forward.1} parent=11 // pred_check
        %p708 = pneg %p445
      $region58: #{gin_forward.1} parent=11 // pred_check_branch
        %710 = sbr.rel (%p708) target = $region60
      $region59: #{gin_forward.1} parent=11 // pred_region
        _
      $region60: #{gin_forward.1} parent=11 // pred_fallthru
        _
      // Predicated region
      $region61: #{gin_forward.1} parent=11 // pred_check
        %p711 = pneg %p466
      $region62: #{gin_forward.1} parent=11 // pred_check_branch
        %713 = sbr.rel (%p711) target = $region64
      $region63: #{gin_forward.1} parent=11 // pred_region
        _
      $region64: #{gin_forward.1} parent=11 // pred_fallthru
        _
      // Predicated region
      $region65: #{gin_forward.1} parent=11 // pred_check
        %p714 = pneg %p487
      $region66: #{gin_forward.1} parent=11 // pred_check_branch
        %716 = sbr.rel (%p714) target = $region68
      $region67: #{gin_forward.1} parent=11 // pred_region
        _
      $region68: #{gin_forward.1} parent=11 // pred_fallthru
        _
      // Predicated region
      $region69: #{gin_forward.1} parent=11 // pred_check
        %p717 = pneg %p508
      $region70: #{gin_forward.1} parent=11 // pred_check_branch
        %719 = sbr.rel (%p717) target = $region72
      $region71: #{gin_forward.1} parent=11 // pred_region
        _
      $region72: #{gin_forward.1} parent=11 // pred_fallthru
        _
      // Predicated region
      $region73: #{gin_forward.1} parent=11 // pred_check
        %p720 = pneg %p529
      $region74: #{gin_forward.1} parent=11 // pred_check_branch
        %722 = sbr.rel (%p720) target = $region76
      $region75: #{gin_forward.1} parent=11 // pred_region
        _
      $region76: #{gin_forward.1} parent=11 // pred_fallthru
        _
      // Predicated region
      $region77: #{gin_forward.1} parent=11 // pred_check
        %p723 = pneg %p550
      $region78: #{gin_forward.1} parent=11 // pred_check_branch
        %725 = sbr.rel (%p723) target = $region80
      $region79: #{gin_forward.1} parent=11 // pred_region
        _
      $region80: #{gin_forward.1} parent=11 // pred_fallthru
        _
      // Predicated region
      $region81: #{gin_forward.1} parent=11 // pred_check
        %p726 = pneg %p571
      $region82: #{gin_forward.1} parent=11 // pred_check_branch
        %728 = sbr.rel (%p726) target = $region84
      $region83: #{gin_forward.1} parent=11 // pred_region
        _
      $region84: #{gin_forward.1} parent=11 // pred_fallthru
        _
      // Predicated region
      $region85: #{gin_forward.1} parent=11 // pred_check
        %p729 = pneg %p592
      $region86: #{gin_forward.1} parent=11 // pred_check_branch
        %731 = sbr.rel (%p729) target = $region88
      $region87: #{gin_forward.1} parent=11 // pred_region
        _
      $region88: #{gin_forward.1} parent=11 // pred_fallthru
        _
      // Predicated region
      $region89: #{gin_forward.1} parent=11 // pred_check
        %p732 = pneg %p613
      $region90: #{gin_forward.1} parent=11 // pred_check_branch
        %734 = sbr.rel (%p732) target = $region92
      $region91: #{gin_forward.1} parent=11 // pred_region
        _
      $region92: #{gin_forward.1} parent=11 // pred_fallthru
        _
      // Predicated region
      $region93: #{gin_forward.1} parent=11 // pred_check
        %p735 = pneg %p634
      $region94: #{gin_forward.1} parent=11 // pred_check_branch
        %737 = sbr.rel (%p735) target = $region96
      $region95: #{gin_forward.1} parent=11 // pred_region
        _
      $region96: #{gin_forward.1} parent=11 // pred_fallthru
        _
    $region12: #{gin_forward.1} parent=5 // pred_fallthru
      _
    %p738 = scmp.lt.s32.totalorder %s37, 2
    // Predicated region
    $region97: #{gin_forward.1} parent=5 // pred_check
      %p739 = pneg %p738
    $region98: #{gin_forward.1} parent=5 // pred_check_branch
      %741 = sbr.rel (%p739) target = $region100
    $region99: #{gin_forward.1} parent=5 // pred_region
      // Predicated region
      $region101: #{gin_forward.1} parent=99 // pred_check
        %p742 = pneg %p57
      $region102: #{gin_forward.1} parent=99 // pred_check_branch
        %744 = sbr.rel (%p742) target = $region104
      $region103: #{gin_forward.1} parent=99 // pred_region
        %p745 = scmp.lt.s32.totalorder %s37, 1
        %s746 = scalar_select %p745, %s37, 1
        %s747 = smul.addr %s746, 4
        %s748 = scalar_lea.vmem %s0, %s747
      $region104: #{gin_forward.1} parent=99 // pred_fallthru
        _
      // Predicated region
      $region105: #{gin_forward.1} parent=99 // pred_check
        %p749 = pneg %p83
      $region106: #{gin_forward.1} parent=99 // pred_check_branch
        %751 = sbr.rel (%p749) target = $region108
      $region107: #{gin_forward.1} parent=99 // pred_region
        %p752 = scmp.lt.s32.totalorder %s37, 1
        %s753 = scalar_select %p752, %s37, 1
        %s754 = smul.addr %s753, 8
        %s755 = scalar_lea.vmem %s1, %s754
      $region108: #{gin_forward.1} parent=99 // pred_fallthru
        _
      // Predicated region
      $region109: #{gin_forward.1} parent=99 // pred_check
        %p756 = pneg %p109
      $region110: #{gin_forward.1} parent=99 // pred_check_branch
        %758 = sbr.rel (%p756) target = $region112
      $region111: #{gin_forward.1} parent=99 // pred_region
        %p759 = scmp.lt.s32.totalorder %s37, 1
        %s760 = scalar_select %p759, %s37, 1
        %s761 = smul.addr %s760, 8
        %s762 = scalar_lea.vmem %s2, %s761
      $region112: #{gin_forward.1} parent=99 // pred_fallthru
        _
      // Predicated region
      $region113: #{gin_forward.1} parent=99 // pred_check
        %p763 = pneg %p135
      $region114: #{gin_forward.1} parent=99 // pred_check_branch
        %765 = sbr.rel (%p763) target = $region116
      $region115: #{gin_forward.1} parent=99 // pred_region
        %p766 = scmp.lt.s32.totalorder %s37, 1
        %s767 = scalar_select %p766, %s37, 1
        %s768 = scalar_lea.vmem %s3, %s767
      $region116: #{gin_forward.1} parent=99 // pred_fallthru
        _
      // Predicated region
      $region117: #{gin_forward.1} parent=99 // pred_check
        %p769 = pneg %p161
      $region118: #{gin_forward.1} parent=99 // pred_check_branch
        %771 = sbr.rel (%p769) target = $region120
      $region119: #{gin_forward.1} parent=99 // pred_region
        %p772 = scmp.lt.s32.totalorder %s37, 1
        %s773 = scalar_select %p772, %s37, 1
        %s774 = scalar_lea.vmem %s4, %s773
      $region120: #{gin_forward.1} parent=99 // pred_fallthru
        _
      // Predicated region
      $region121: #{gin_forward.1} parent=99 // pred_check
        %p775 = pneg %p187
      $region122: #{gin_forward.1} parent=99 // pred_check_branch
        %777 = sbr.rel (%p775) target = $region124
      $region123: #{gin_forward.1} parent=99 // pred_region
        %p778 = scmp.lt.s32.totalorder %s37, 1
        %s779 = scalar_select %p778, %s37, 1
        %s780 = scalar_lea.vmem %s5, %s779
      $region124: #{gin_forward.1} parent=99 // pred_fallthru
        _
    $region100: #{gin_forward.1} parent=5 // pred_fallthru
      _
    %p781 = scmp.le.s32.totalorder 1, %s37
    %p782 = scmp.lt.s32.totalorder %s37, 3
    %p783 = pnand %p781, %p782
    %p784 = pneg %p783
    // Predicated region
    $region125: #{gin_forward.1} parent=5 // pred_check
      _
    $region126: #{gin_forward.1} parent=5 // pred_check_branch
      %786 = sbr.rel (%p783) target = $region128
    $region127: #{gin_forward.1} parent=5 // pred_region
      %s787 = ssub.s32 %s37, 1
      %p788 = scmp.lt.s32.totalorder %s42, 1
      %s789 = scalar_select %p788, %s42, 1
      %s790 = smul.addr %s789, 4
      %s791 = scalar_lea.vmem %s0, %s790
      %p792 = pneg %p63
      %p793 = pneg %p60
      %p794 = scmp.lt.s32.totalorder %s42, 1
      %s795 = scalar_select %p794, %s42, 1
      %s796 = smul.addr %s795, 8
      %s797 = scalar_lea.vmem %s1, %s796
      %p798 = pneg %p89
      %p799 = pneg %p86
      %p800 = scmp.lt.s32.totalorder %s42, 1
      %s801 = scalar_select %p800, %s42, 1
      %s802 = smul.addr %s801, 8
      %s803 = scalar_lea.vmem %s2, %s802
      %p804 = pneg %p115
      %p805 = pneg %p112
      %p806 = scmp.lt.s32.totalorder %s42, 1
      %s807 = scalar_select %p806, %s42, 1
      %s808 = scalar_lea.vmem %s3, %s807
      %p809 = pneg %p141
      %p810 = pneg %p138
      %p811 = scmp.lt.s32.totalorder %s42, 1
      %s812 = scalar_select %p811, %s42, 1
      %s813 = scalar_lea.vmem %s4, %s812
      %p814 = pneg %p167
      %p815 = pneg %p164
      %p816 = scmp.lt.s32.totalorder %s42, 1
      %s817 = scalar_select %p816, %s42, 1
      %s818 = scalar_lea.vmem %s5, %s817
      %p819 = pneg %p193
      %p820 = pneg %p190
      %p821 = pneg %p214
      %p822 = pneg %p211
      %p823 = pneg %p235
      %p824 = pneg %p232
      %p825 = pneg %p256
      %p826 = pneg %p253
      %p827 = pneg %p277
      %p828 = pneg %p274
      %p829 = pneg %p298
      %p830 = pneg %p295
      %p831 = pneg %p319
      %p832 = pneg %p316
      %p833 = pneg %p340
      %p834 = pneg %p337
      %p835 = pneg %p361
      %p836 = pneg %p358
      %p837 = pneg %p382
      %p838 = pneg %p379
      %p839 = pneg %p403
      %p840 = pneg %p400
      %p841 = pneg %p424
      %p842 = pneg %p421
      %p843 = pneg %p445
      %p844 = pneg %p442
      %p845 = pneg %p466
      %p846 = pneg %p463
      %p847 = pneg %p487
      %p848 = pneg %p484
      %p849 = pneg %p508
      %p850 = pneg %p505
      %p851 = pneg %p529
      %p852 = pneg %p526
      %p853 = pneg %p550
      %p854 = pneg %p547
      %p855 = pneg %p571
      %p856 = pneg %p568
      %p857 = pneg %p592
      %p858 = pneg %p589
      %p859 = pneg %p613
      %p860 = pneg %p610
      %p861 = pneg %p634
      %p862 = pneg %p631
      %p863 = pneg %p660
      %p864 = pneg %p657
      %p865 = scmp.lt.s32.totalorder %s42, 1
      %s866 = scalar_select %p865, %s42, 1
      %s867 = smul.addr %s866, 8
      %s868 = scalar_lea.vmem %s27, %s867
      %p869 = scmp.lt.s32.totalorder %s42, 1
      %s870 = scalar_select %p869, %s42, 1
      %s871 = smul.addr %s870, 4
      %s872 = scalar_lea.vmem %s0, %s871
      %p873 = scmp.lt.s32.totalorder %s42, 1
      %s874 = scalar_select %p873, %s42, 1
      %s875 = smul.addr %s874, 8
      %s876 = scalar_lea.vmem %s1, %s875
      %p877 = scmp.lt.s32.totalorder %s42, 1
      %s878 = scalar_select %p877, %s42, 1
      %s879 = smul.addr %s878, 8
      %s880 = scalar_lea.vmem %s2, %s879
      %p881 = scmp.lt.s32.totalorder %s42, 1
      %s882 = scalar_select %p881, %s42, 1
      %s883 = scalar_lea.vmem %s3, %s882
      %p884 = scmp.lt.s32.totalorder %s42, 1
      %s885 = scalar_select %p884, %s42, 1
      %s886 = scalar_lea.vmem %s4, %s885
      %p887 = scmp.lt.s32.totalorder %s42, 1
      %s888 = scalar_select %p887, %s42, 1
      %s889 = scalar_lea.vmem %s5, %s888
      %p890 = scmp.lt.s32.totalorder %s42, 1
      %s891 = scalar_select %p890, %s42, 1
      %s892 = smul.addr %s891, 8
      %s893 = scalar_lea.vmem %s27, %s892
      %v895 = vld [vmem:[%s872] sm:$0xf]
      %v896 = vld [vmem:[%s876] sm:$0xff]
      %v897 = vld [vmem:[%s880] sm:$0xff]
      %v898 = vlaneseq
      %v899 = vshrl.u32 %v898, 7
      %v900 = vlaneseq
      %v901 = vand.u32 %v900, 127
      %vm902 = vcmp.eq.s32.totalorder %v899, %v901
      %vm903 = vcmp.lt.s32.totalorder %v901, %v899
      %v904 = vunpack.c.l.bf16 %v895
      %vm905 = vcmask 64512
      %v906 = vsel %vm905, %v904, 0.0
      %907 = vadd.xlane.f32.xlu0 %v906
      %v908 = vpop.xlane.xlu0 %907
      %v909 = vadd.f32 %v908, 1.0
      %v910 = vpack.c.bf16 %v896, %v896
      %v912 = vsel %vm905, %v895, 0
      %vm914 = vcmask 1043456
      %v916 = vsel %vm914, %v910, 0
      %918 = vmatprep.subr.bf16.mxu0 0
      %919 = vmatpush1.bf16.msra.mxu0 %v916
      %920 = vmatprep.subr.bf16.mxu0 0
      %921 = vmatpush1.bf16.msra.mxu0 0
      %922 = vmatprep.subr.bf16.mxu0 0
      %923 = vmatpush1.bf16.msra.mxu0 0
      %924 = vmatprep.subr.bf16.mxu0 0
      %925 = vmatpush1.bf16.msra.mxu0 0
      %926 = vmatprep.subr.bf16.mxu0 0
      %927 = vmatpush1.bf16.msra.mxu0 0
      %928 = vmatprep.subr.bf16.mxu0 0
      %929 = vmatpush1.bf16.msra.mxu0 0
      %930 = vmatprep.subr.bf16.mxu0 0
      %931 = vmatpush1.bf16.msra.mxu0 0
      %932 = vmatprep.subr.bf16.mxu0 0
      %933 = vmatpush1.bf16.msra.mxu0 0
      %934 = vmatprep.subr.bf16.mxu0 0
      %935 = vmatpush1.bf16.msra.mxu0 0
      %936 = vmatprep.subr.bf16.mxu0 0
      %937 = vmatpush1.bf16.msra.mxu0 0
      %938 = vmatprep.subr.bf16.mxu0 0
      %939 = vmatpush1.bf16.msra.mxu0 0
      %940 = vmatprep.subr.bf16.mxu0 0
      %941 = vmatpush1.bf16.msra.mxu0 0
      %942 = vmatprep.subr.bf16.mxu0 0
      %943 = vmatpush1.bf16.msra.mxu0 0
      %944 = vmatprep.subr.bf16.mxu0 0
      %945 = vmatpush1.bf16.msra.mxu0 0
      %946 = vmatprep.subr.bf16.mxu0 0
      %947 = vmatpush1.bf16.msra.mxu0 0
      %948 = vmatprep.subr.bf16.mxu0 0
      %949 = vmatpush1.bf16.msra.mxu0 0
      %950 = vmatprep.mubr.bf16.mxu0 0
      %951 = vmatmul.mubr.bf16.gmra.mrb[0].mxu0 %v912
      %v952 = vpop.f32.mrb[0].mxu0
      %v953 = vadd.f32 %v896, %v952
      %v954 = vpop.f32.mrb[0].mxu0
      %v955 = vpop.f32.mrb[0].mxu0
      %v956 = vpop.f32.mrb[0].mxu0
      %957 = vdwg.mxu0
      %v958 = vpack.c.bf16 %v953, %v953
      %v959 = vld [vmem:[%s6] sm:$0xf]
      %v960 = vld [vmem:[%s7] sm:$0x1]
      %v962 = vlaneseq
      %v963 = vshrl.u32 %v962, 7
      %v964 = vsub.s32 0, %v963
      %v965 = vrot.slane %v960, %v964
      %v967 = vmul.f32 %v909, %v965
      %v969 = vsel %vm905, %v958, 0
      %v972 = vsel %vm914, %v959, 0
      %974 = vmatprep.subr.bf16.mxu0 0
      %975 = vmatpush1.bf16.msra.mxu0 %v972
      %976 = vmatprep.subr.bf16.mxu0 0
      %977 = vmatpush1.bf16.msra.mxu0 0
      %978 = vmatprep.subr.bf16.mxu0 0
      %979 = vmatpush1.bf16.msra.mxu0 0
      %980 = vmatprep.subr.bf16.mxu0 0
      %981 = vmatpush1.bf16.msra.mxu0 0
      %982 = vmatprep.subr.bf16.mxu0 0
      %983 = vmatpush1.bf16.msra.mxu0 0
      %984 = vmatprep.subr.bf16.mxu0 0
      %985 = vmatpush1.bf16.msra.mxu0 0
      %986 = vmatprep.subr.bf16.mxu0 0
      %987 = vmatpush1.bf16.msra.mxu0 0
      %988 = vmatprep.subr.bf16.mxu0 0
      %989 = vmatpush1.bf16.msra.mxu0 0
      %990 = vmatprep.subr.bf16.mxu0 0
      %991 = vmatpush1.bf16.msra.mxu0 0
      %992 = vmatprep.subr.bf16.mxu0 0
      %993 = vmatpush1.bf16.msra.mxu0 0
      %994 = vmatprep.subr.bf16.mxu0 0
      %995 = vmatpush1.bf16.msra.mxu0 0
      %996 = vmatprep.subr.bf16.mxu0 0
      %997 = vmatpush1.bf16.msra.mxu0 0
      %998 = vmatprep.subr.bf16.mxu0 0
      %999 = vmatpush1.bf16.msra.mxu0 0
      %1000 = vmatprep.subr.bf16.mxu0 0
      %1001 = vmatpush1.bf16.msra.mxu0 0
      %1002 = vmatprep.subr.bf16.mxu0 0
      %1003 = vmatpush1.bf16.msra.mxu0 0
      %1004 = vmatprep.subr.bf16.mxu0 0
      %1005 = vmatpush1.bf16.msra.mxu0 0
      %1006 = vmatprep.mubr.bf16.mxu0 0
      %1007 = vmatmul.mubr.bf16.gmra.mrb[0].mxu0 %v969
      %v1008 = vpop.f32.mrb[0].mxu0
      %v1009 = vadd.f32 %v967, %v1008
      %v1010 = vpop.f32.mrb[0].mxu0
      %v1011 = vpop.f32.mrb[0].mxu0
      %v1012 = vpop.f32.mrb[0].mxu0
      %1013 = vdwg.mxu0
      %v1014 = vld [vmem:[%s8] sm:$0x1]
      %v1016 = vlaneseq
      %v1017 = vshrl.u32 %v1016, 7
      %v1018 = vsub.s32 0, %v1017
      %v1019 = vrot.slane %v1014, %v1018
      %v1021 = vadd.f32 %v1009, %v1019
      %v1022 = vmax.f32 %v1021, 0.0
      %v1023 = vpack.c.bf16 %v1022, %v1022
      %v1024 = vld [vmem:[%s9] sm:$0xf]
      %v1025 = vld [vmem:[%s9 + $0x4] sm:$0xf]
      %v1026 = vld [vmem:[%s9 + $0x8] sm:$0xf]
      %v1027 = vld [vmem:[%s9 + $0xc] sm:$0xf]
      %v1028 = vld [vmem:[%s10] sm:$0x1]
      %v1030 = vlaneseq
      %v1031 = vshrl.u32 %v1030, 7
      %v1032 = vsub.s32 0, %v1031
      %v1033 = vrot.slane %v1028, %v1032
      %v1039 = vunpack.c.l.b16 %v1024
      %v1040 = vunpack.c.l.b16 %v1025
      %v1041 = vunpack.c.l.b16 %v1026
      %v1042 = vunpack.c.l.b16 %v1027
      %v1043 = vpack.c.b16 %v1040, %v1039
      %v1044 = vpack.c.b16 %v1042, %v1041
      %vm1047 = vcmask 261120
      %v1049 = vsel %vm1047, %v1023, 0
      %1051 = vmatprep.subr.bf16.mxu0 0
      %1052 = vmatpush1.bf16.msra.mxu0 %v1043
      %1053 = vmatprep.subr.bf16.mxu0 0
      %1054 = vmatpush1.bf16.msra.mxu0 %v1044
      %1055 = vmatprep.subr.bf16.mxu0 0
      %1056 = vmatpush1.bf16.msra.mxu0 0
      %1057 = vmatprep.subr.bf16.mxu0 0
      %1058 = vmatpush1.bf16.msra.mxu0 0
      %1059 = vmatprep.subr.bf16.mxu0 0
      %1060 = vmatpush1.bf16.msra.mxu0 0
      %1061 = vmatprep.subr.bf16.mxu0 0
      %1062 = vmatpush1.bf16.msra.mxu0 0
      %1063 = vmatprep.subr.bf16.mxu0 0
      %1064 = vmatpush1.bf16.msra.mxu0 0
      %1065 = vmatprep.subr.bf16.mxu0 0
      %1066 = vmatpush1.bf16.msra.mxu0 0
      %1067 = vmatprep.subr.bf16.mxu0 0
      %1068 = vmatpush1.bf16.msra.mxu0 0
      %1069 = vmatprep.subr.bf16.mxu0 0
      %1070 = vmatpush1.bf16.msra.mxu0 0
      %1071 = vmatprep.subr.bf16.mxu0 0
      %1072 = vmatpush1.bf16.msra.mxu0 0
      %1073 = vmatprep.subr.bf16.mxu0 0
      %1074 = vmatpush1.bf16.msra.mxu0 0
      %1075 = vmatprep.subr.bf16.mxu0 0
      %1076 = vmatpush1.bf16.msra.mxu0 0
      %1077 = vmatprep.subr.bf16.mxu0 0
      %1078 = vmatpush1.bf16.msra.mxu0 0
      %1079 = vmatprep.subr.bf16.mxu0 0
      %1080 = vmatpush1.bf16.msra.mxu0 0
      %1081 = vmatprep.subr.bf16.mxu0 0
      %1082 = vmatpush1.bf16.msra.mxu0 0
      %1083 = vmatprep.mubr.bf16.mxu0 0
      %1084 = vmatmul.mubr.bf16.gmra.mrb[0].mxu0 %v1049
      %v1085 = vpop.f32.mrb[0].mxu0
      %v1086 = vadd.f32 %v1033, %v1085
      %v1087 = vpop.f32.mrb[0].mxu0
      %v1088 = vpop.f32.mrb[0].mxu0
      %v1089 = vpop.f32.mrb[0].mxu0
      %1090 = vdwg.mxu0
      %v1091 = vmax.f32 %v1086, 0.0
      %1093 = vset.pattern.permute.xlu0 0
      %1094 = vperm.xlu0 %1093, %v897
      %v1095 = vpop.permute.xlu0 %1094
      %v1097 = vmul.f32 %v1091, %v1095
      %v1098 = vld [vmem:[%s883] sm:$0x1]
      %v1099 = vpack.c.bf16 %v1097, %v1097
      %v1100 = vld [vmem:[%s23] sm:$0xf]
      %v1101 = vld [vmem:[%s23 + $0x4] sm:$0xf]
      %v1102 = vld [vmem:[%s23 + $0x8] sm:$0xf]
      %v1103 = vld [vmem:[%s23 + $0xc] sm:$0xf]
      %v1108 = vunpack.c.l.b16 %v1100
      %v1109 = vunpack.c.l.b16 %v1101
      %v1110 = vunpack.c.l.b16 %v1102
      %v1111 = vunpack.c.l.b16 %v1103
      %v1112 = vpack.c.b16 %v1109, %v1108
      %v1113 = vpack.c.b16 %v1111, %v1110
      %v1117 = vsel %vm1047, %v1099, 0
      %1119 = vmatprep.subr.bf16.mxu0 0
      %1120 = vmatpush1.bf16.msra.mxu0 %v1112
      %1121 = vmatprep.subr.bf16.mxu0 0
      %1122 = vmatpush1.bf16.msra.mxu0 %v1113
      %1123 = vmatprep.subr.bf16.mxu0 0
      %1124 = vmatpush1.bf16.msra.mxu0 0
      %1125 = vmatprep.subr.bf16.mxu0 0
      %1126 = vmatpush1.bf16.msra.mxu0 0
      %1127 = vmatprep.subr.bf16.mxu0 0
      %1128 = vmatpush1.bf16.msra.mxu0 0
      %1129 = vmatprep.subr.bf16.mxu0 0
      %1130 = vmatpush1.bf16.msra.mxu0 0
      %1131 = vmatprep.subr.bf16.mxu0 0
      %1132 = vmatpush1.bf16.msra.mxu0 0
      %1133 = vmatprep.subr.bf16.mxu0 0
      %1134 = vmatpush1.bf16.msra.mxu0 0
      %1135 = vmatprep.subr.bf16.mxu0 0
      %1136 = vmatpush1.bf16.msra.mxu0 0
      %1137 = vmatprep.subr.bf16.mxu0 0
      %1138 = vmatpush1.bf16.msra.mxu0 0
      %1139 = vmatprep.subr.bf16.mxu0 0
      %1140 = vmatpush1.bf16.msra.mxu0 0
      %1141 = vmatprep.subr.bf16.mxu0 0
      %1142 = vmatpush1.bf16.msra.mxu0 0
      %1143 = vmatprep.subr.bf16.mxu0 0
      %1144 = vmatpush1.bf16.msra.mxu0 0
      %1145 = vmatprep.subr.bf16.mxu0 0
      %1146 = vmatpush1.bf16.msra.mxu0 0
      %1147 = vmatprep.subr.bf16.mxu0 0
      %1148 = vmatpush1.bf16.msra.mxu0 0
      %1149 = vmatprep.subr.bf16.mxu0 0
      %1150 = vmatpush1.bf16.msra.mxu0 0
      %1151 = vmatprep.mubr.bf16.mxu0 0
      %1152 = vmatmul.mubr.bf16.gmra.mrb[0].mxu0 %v1117
      %v1153 = vpop.f32.mrb[0].mxu0
      %v1154 = vadd.f32 0.0, %v1153
      %v1155 = vpop.f32.mrb[0].mxu0
      %v1156 = vpop.f32.mrb[0].mxu0
      %v1157 = vpop.f32.mrb[0].mxu0
      %1158 = vdwg.mxu0
      %v1159 = vpack.c.bf16 %v1154, %v1154
      %1161 = vrot.lane.b32.xlu0 %v1154, 127
      %v1162 = vpop.permute.xlu0 %1161
      %v1165 = vsel %vm914, %v1159, 0
      %1167 = vmatprep.subr.bf16.mxu0 0
      %1168 = vmatpush1.bf16.msra.mxu0 %v1165
      %1169 = vmatprep.subr.bf16.mxu0 0
      %1170 = vmatpush1.bf16.msra.mxu0 0
      %1171 = vmatprep.subr.bf16.mxu0 0
      %1172 = vmatpush1.bf16.msra.mxu0 0
      %1173 = vmatprep.subr.bf16.mxu0 0
      %1174 = vmatpush1.bf16.msra.mxu0 0
      %1175 = vmatprep.subr.bf16.mxu0 0
      %1176 = vmatpush1.bf16.msra.mxu0 0
      %1177 = vmatprep.subr.bf16.mxu0 0
      %1178 = vmatpush1.bf16.msra.mxu0 0
      %1179 = vmatprep.subr.bf16.mxu0 0
      %1180 = vmatpush1.bf16.msra.mxu0 0
      %1181 = vmatprep.subr.bf16.mxu0 0
      %1182 = vmatpush1.bf16.msra.mxu0 0
      %1183 = vmatprep.subr.bf16.mxu0 0
      %1184 = vmatpush1.bf16.msra.mxu0 0
      %1185 = vmatprep.subr.bf16.mxu0 0
      %1186 = vmatpush1.bf16.msra.mxu0 0
      %1187 = vmatprep.subr.bf16.mxu0 0
      %1188 = vmatpush1.bf16.msra.mxu0 0
      %1189 = vmatprep.subr.bf16.mxu0 0
      %1190 = vmatpush1.bf16.msra.mxu0 0
      %1191 = vmatprep.subr.bf16.mxu0 0
      %1192 = vmatpush1.bf16.msra.mxu0 0
      %1193 = vmatprep.subr.bf16.mxu0 0
      %1194 = vmatpush1.bf16.msra.mxu0 0
      %1195 = vmatprep.subr.bf16.mxu0 0
      %1196 = vmatpush1.bf16.msra.mxu0 0
      %1197 = vmatprep.subr.bf16.mxu0 0
      %1198 = vmatpush1.bf16.msra.mxu0 0
      %1199 = vmatprep.mubr.bf16.mxu0 0
      %1200 = vmatmul.mubr.bf16.gmra.mrb[0].mxu0 %v912
      %v1201 = vpop.f32.mrb[0].mxu0
      %v1202 = vadd.f32 %v1162, %v1201
      %v1203 = vpop.f32.mrb[0].mxu0
      %v1204 = vpop.f32.mrb[0].mxu0
      %v1205 = vpop.f32.mrb[0].mxu0
      %1206 = vdwg.mxu0
      %v1207 = vld [vmem:[#allocation2] sm:$0x1]
      %v1209 = vlaneseq
      %v1210 = vshrl.u32 %v1209, 7
      %v1211 = vsub.s32 0, %v1210
      %v1212 = vrot.slane %v1207, %v1211
      %v1214 = vadd.f32 %v1202, %v1212
      %v1215 = vtanh.pop %v1214
      %1217 = vset.pattern.permute.xlu0 0
      %1218 = vperm.xlu0 %1217, %v1215
      %v1219 = vpop.permute.xlu0 %1218
      %v1221 = vsel %vm902, %v1219, 0.0
      %v1222 = vsel %vm905, %v1221, 0.0
      %v1223 = vrot.slane %v1222, 4
      %v1224 = vadd.f32 %v1222, %v1223
      %v1225 = vrot.slane %v1224, 2
      %v1226 = vadd.f32 %v1224, %v1225
      %v1227 = vrot.slane %v1226, 1
      %v1228 = vadd.f32 %v1226, %v1227
      %vm1229 = vcmp.gt.f32.partialorder %v1228, %v1219
      %vm1230 = vcmp.eq.f32.partialorder %v1228, %v1219
      %vm1231 = vmand %vm1230, %vm903
      %vm1232 = vmor %vm1229, %vm1231
      %v1233 = vsel %vm1232, 1.0, 0.0
      %v1235 = vsel %vm905, %v1233, 0
      %1237 = vmatprep.subr.mxu0 0.0
      %1238 = vmatpush1.msra.mxu0 %v897
      %1239 = vmatprep.subr.mxu0 0.0
      %1240 = vmatpush1.msra.mxu0 0.0
      %1241 = vmatprep.subr.mxu0 0.0
      %1242 = vmatpush1.msra.mxu0 0.0
      %1243 = vmatprep.subr.mxu0 0.0
      %1244 = vmatpush1.msra.mxu0 0.0
      %1245 = vmatprep.subr.mxu0 0.0
      %1246 = vmatpush1.msra.mxu0 0.0
      %1247 = vmatprep.subr.mxu0 0.0
      %1248 = vmatpush1.msra.mxu0 0.0
      %1249 = vmatprep.subr.mxu0 0.0
      %1250 = vmatpush1.msra.mxu0 0.0
      %1251 = vmatprep.subr.mxu0 0.0
      %1252 = vmatpush1.msra.mxu0 0.0
      %1253 = vmatprep.subr.mxu0 0.0
      %1254 = vmatpush1.msra.mxu0 0.0
      %1255 = vmatprep.subr.mxu0 0.0
      %1256 = vmatpush1.msra.mxu0 0.0
      %1257 = vmatprep.subr.mxu0 0.0
      %1258 = vmatpush1.msra.mxu0 0.0
      %1259 = vmatprep.subr.mxu0 0.0
      %1260 = vmatpush1.msra.mxu0 0.0
      %1261 = vmatprep.subr.mxu0 0.0
      %1262 = vmatpush1.msra.mxu0 0.0
      %1263 = vmatprep.subr.mxu0 0.0
      %1264 = vmatpush1.msra.mxu0 0.0
      %1265 = vmatprep.subr.mxu0 0.0
      %1266 = vmatpush1.msra.mxu0 0.0
      %1267 = vmatprep.subr.mxu0 0.0
      %1268 = vmatpush1.msra.mxu0 0.0
      %1269 = vmatprep.subr.mxu0 0.0
      %1270 = vmatpush1.msra.mxu0 0.0
      %1271 = vmatprep.subr.mxu0 0.0
      %1272 = vmatpush1.msra.mxu0 0.0
      %1273 = vmatprep.subr.mxu0 0.0
      %1274 = vmatpush1.msra.mxu0 0.0
      %1275 = vmatprep.subr.mxu0 0.0
      %1276 = vmatpush1.msra.mxu0 0.0
      %1277 = vmatprep.subr.mxu0 0.0
      %1278 = vmatpush1.msra.mxu0 0.0
      %1279 = vmatprep.subr.mxu0 0.0
      %1280 = vmatpush1.msra.mxu0 0.0
      %1281 = vmatprep.subr.mxu0 0.0
      %1282 = vmatpush1.msra.mxu0 0.0
      %1283 = vmatprep.subr.mxu0 0.0
      %1284 = vmatpush1.msra.mxu0 0.0
      %1285 = vmatprep.subr.mxu0 0.0
      %1286 = vmatpush1.msra.mxu0 0.0
      %1287 = vmatprep.subr.mxu0 0.0
      %1288 = vmatpush1.msra.mxu0 0.0
      %1289 = vmatprep.subr.mxu0 0.0
      %1290 = vmatpush1.msra.mxu0 0.0
      %1291 = vmatprep.subr.mxu0 0.0
      %1292 = vmatpush1.msra.mxu0 0.0
      %1293 = vmatprep.subr.mxu0 0.0
      %1294 = vmatpush1.msra.mxu0 0.0
      %1295 = vmatprep.subr.mxu0 0.0
      %1296 = vmatpush1.msra.mxu0 0.0
      %1297 = vmatprep.subr.mxu0 0.0
      %1298 = vmatpush1.msra.mxu0 0.0
      %1299 = vmatprep.subr.mxu0 0.0
      %1300 = vmatpush1.msra.mxu0 0.0
      %1301 = vmatprep.mubr.f32.mxu0 0.0
      %1302 = vmatmul.mubr.f32.gmra.mrb[0].mxu0 %v1235
      %v1303 = vpop.f32.mrb[0].mxu0
      %v1304 = vadd.f32 0.0, %v1303
      %v1305 = vpop.f32.mrb[0].mxu0
      %1306 = vdwg.mxu0
      %v1308 = vlaneseq
      %v1309 = vshrl.u32 %v1308, 7
      %v1310 = vsub.s32 0, %v1309
      %v1311 = vrot.slane %v1098, %v1310
      %vm1313 = vcmp.lt.f32.partialorder %v1304, %v1311
      %v1314 = vsel %vm1313, 1.0, 0.0
      %v1315 = vmul.f32 %v1314, %v897
      %v1316 = vmul.f32 %v1097, %v1219
      %1318 = vset.pattern.permute.xlu0 0
      %1319 = vperm.xlu0 %1318, %v1315
      %v1320 = vpop.permute.xlu0 %1319
      %v1322 = vmul.f32 %v1316, %v1320
      %v1323 = vpack.c.bf16 %v1322, %v1322
      %v1325 = vsel %vm914, %v1323, 0
      %1327 = vmatprep.subr.bf16.mxu0 0
      %1328 = vmatpush1.bf16.msra.mxu0 %v1325
      %1329 = vmatprep.subr.bf16.mxu0 0
      %1330 = vmatpush1.bf16.msra.mxu0 0
      %1331 = vmatprep.subr.bf16.mxu0 0
      %1332 = vmatpush1.bf16.msra.mxu0 0
      %1333 = vmatprep.subr.bf16.mxu0 0
      %1334 = vmatpush1.bf16.msra.mxu0 0
      %1335 = vmatprep.subr.bf16.mxu0 0
      %1336 = vmatpush1.bf16.msra.mxu0 0
      %1337 = vmatprep.subr.bf16.mxu0 0
      %1338 = vmatpush1.bf16.msra.mxu0 0
      %1339 = vmatprep.subr.bf16.mxu0 0
      %1340 = vmatpush1.bf16.msra.mxu0 0
      %1341 = vmatprep.subr.bf16.mxu0 0
      %1342 = vmatpush1.bf16.msra.mxu0 0
      %1343 = vmatprep.subr.bf16.mxu0 0
      %1344 = vmatpush1.bf16.msra.mxu0 0
      %1345 = vmatprep.subr.bf16.mxu0 0
      %1346 = vmatpush1.bf16.msra.mxu0 0
      %1347 = vmatprep.subr.bf16.mxu0 0
      %1348 = vmatpush1.bf16.msra.mxu0 0
      %1349 = vmatprep.subr.bf16.mxu0 0
      %1350 = vmatpush1.bf16.msra.mxu0 0
      %1351 = vmatprep.subr.bf16.mxu0 0
      %1352 = vmatpush1.bf16.msra.mxu0 0
      %1353 = vmatprep.subr.bf16.mxu0 0
      %1354 = vmatpush1.bf16.msra.mxu0 0
      %1355 = vmatprep.subr.bf16.mxu0 0
      %1356 = vmatpush1.bf16.msra.mxu0 0
      %1357 = vmatprep.subr.bf16.mxu0 0
      %1358 = vmatpush1.bf16.msra.mxu0 0
      %1359 = vmatprep.mubr.bf16.mxu0 0
      %1360 = vmatmul.mubr.bf16.gmra.mrb[0].mxu0 %v912
      %v1361 = vpop.f32.mrb[0].mxu0
      %v1362 = vadd.f32 %v1322, %v1361
      %v1363 = vpop.f32.mrb[0].mxu0
      %v1364 = vpop.f32.mrb[0].mxu0
      %v1365 = vpop.f32.mrb[0].mxu0
      %1366 = vdwg.mxu0
      %v1367 = vpack.c.bf16 %v1362, %v1362
      %v1368 = vld [vmem:[%s11] sm:$0xf]
      %v1369 = vld [vmem:[%s11 + $0x4] sm:$0xf]
      %v1370 = vld [vmem:[%s11 + $0x8] sm:$0xf]
      %v1371 = vld [vmem:[%s11 + $0xc] sm:$0xf]
      %v1372 = vld [vmem:[%s12] sm:$0x1]
      %v1374 = vlaneseq
      %v1375 = vshrl.u32 %v1374, 7
      %v1376 = vsub.s32 0, %v1375
      %v1377 = vrot.slane %v1372, %v1376
      %v1383 = vunpack.c.l.b16 %v1368
      %v1384 = vunpack.c.l.b16 %v1369
      %v1385 = vunpack.c.l.b16 %v1370
      %v1386 = vunpack.c.l.b16 %v1371
      %v1387 = vpack.c.b16 %v1384, %v1383
      %v1388 = vpack.c.b16 %v1386, %v1385
      %v1392 = vsel %vm1047, %v1367, 0
      %1394 = vmatprep.subr.bf16.mxu0 0
      %1395 = vmatpush1.bf16.msra.mxu0 %v1387
      %1396 = vmatprep.subr.bf16.mxu0 0
      %1397 = vmatpush1.bf16.msra.mxu0 %v1388
      %1398 = vmatprep.subr.bf16.mxu0 0
      %1399 = vmatpush1.bf16.msra.mxu0 0
      %1400 = vmatprep.subr.bf16.mxu0 0
      %1401 = vmatpush1.bf16.msra.mxu0 0
      %1402 = vmatprep.subr.bf16.mxu0 0
      %1403 = vmatpush1.bf16.msra.mxu0 0
      %1404 = vmatprep.subr.bf16.mxu0 0
      %1405 = vmatpush1.bf16.msra.mxu0 0
      %1406 = vmatprep.subr.bf16.mxu0 0
      %1407 = vmatpush1.bf16.msra.mxu0 0
      %1408 = vmatprep.subr.bf16.mxu0 0
      %1409 = vmatpush1.bf16.msra.mxu0 0
      %1410 = vmatprep.subr.bf16.mxu0 0
      %1411 = vmatpush1.bf16.msra.mxu0 0
      %1412 = vmatprep.subr.bf16.mxu0 0
      %1413 = vmatpush1.bf16.msra.mxu0 0
      %1414 = vmatprep.subr.bf16.mxu0 0
      %1415 = vmatpush1.bf16.msra.mxu0 0
      %1416 = vmatprep.subr.bf16.mxu0 0
      %1417 = vmatpush1.bf16.msra.mxu0 0
      %1418 = vmatprep.subr.bf16.mxu0 0
      %1419 = vmatpush1.bf16.msra.mxu0 0
      %1420 = vmatprep.subr.bf16.mxu0 0
      %1421 = vmatpush1.bf16.msra.mxu0 0
      %1422 = vmatprep.subr.bf16.mxu0 0
      %1423 = vmatpush1.bf16.msra.mxu0 0
      %1424 = vmatprep.subr.bf16.mxu0 0
      %1425 = vmatpush1.bf16.msra.mxu0 0
      %1426 = vmatprep.mubr.bf16.mxu0 0
      %1427 = vmatmul.mubr.bf16.gmra.mrb[0].mxu0 %v1392
      %v1428 = vpop.f32.mrb[0].mxu0
      %v1429 = vadd.f32 %v1377, %v1428
      %v1430 = vpop.f32.mrb[0].mxu0
      %v1431 = vpop.f32.mrb[0].mxu0
      %v1432 = vpop.f32.mrb[0].mxu0
      %1433 = vdwg.mxu0
      %v1434 = vmax.f32 %v1429, 0.0
      %v1435 = vpack.c.bf16 %v1434, %v1434
      %v1436 = vld [vmem:[%s13] sm:$0xf]
      %v1437 = vld [vmem:[%s13 + $0x4] sm:$0xf]
      %v1438 = vld [vmem:[%s13 + $0x8] sm:$0xf]
      %v1439 = vld [vmem:[%s13 + $0xc] sm:$0xf]
      %v1440 = vld [vmem:[%s14] sm:$0x1]
      %v1442 = vlaneseq
      %v1443 = vshrl.u32 %v1442, 7
      %v1444 = vsub.s32 0, %v1443
      %v1445 = vrot.slane %v1440, %v1444
      %v1451 = vunpack.c.l.b16 %v1436
      %v1452 = vunpack.c.l.b16 %v1437
      %v1453 = vunpack.c.l.b16 %v1438
      %v1454 = vunpack.c.l.b16 %v1439
      %v1455 = vpack.c.b16 %v1452, %v1451
      %v1456 = vpack.c.b16 %v1454, %v1453
      %v1460 = vsel %vm1047, %v1435, 0
      %1462 = vmatprep.subr.bf16.mxu0 0
      %1463 = vmatpush1.bf16.msra.mxu0 %v1455
      %1464 = vmatprep.subr.bf16.mxu0 0
      %1465 = vmatpush1.bf16.msra.mxu0 %v1456
      %1466 = vmatprep.subr.bf16.mxu0 0
      %1467 = vmatpush1.bf16.msra.mxu0 0
      %1468 = vmatprep.subr.bf16.mxu0 0
      %1469 = vmatpush1.bf16.msra.mxu0 0
      %1470 = vmatprep.subr.bf16.mxu0 0
      %1471 = vmatpush1.bf16.msra.mxu0 0
      %1472 = vmatprep.subr.bf16.mxu0 0
      %1473 = vmatpush1.bf16.msra.mxu0 0
      %1474 = vmatprep.subr.bf16.mxu0 0
      %1475 = vmatpush1.bf16.msra.mxu0 0
      %1476 = vmatprep.subr.bf16.mxu0 0
      %1477 = vmatpush1.bf16.msra.mxu0 0
      %1478 = vmatprep.subr.bf16.mxu0 0
      %1479 = vmatpush1.bf16.msra.mxu0 0
      %1480 = vmatprep.subr.bf16.mxu0 0
      %1481 = vmatpush1.bf16.msra.mxu0 0
      %1482 = vmatprep.subr.bf16.mxu0 0
      %1483 = vmatpush1.bf16.msra.mxu0 0
      %1484 = vmatprep.subr.bf16.mxu0 0
      %1485 = vmatpush1.bf16.msra.mxu0 0
      %1486 = vmatprep.subr.bf16.mxu0 0
      %1487 = vmatpush1.bf16.msra.mxu0 0
      %1488 = vmatprep.subr.bf16.mxu0 0
      %1489 = vmatpush1.bf16.msra.mxu0 0
      %1490 = vmatprep.subr.bf16.mxu0 0
      %1491 = vmatpush1.bf16.msra.mxu0 0
      %1492 = vmatprep.subr.bf16.mxu0 0
      %1493 = vmatpush1.bf16.msra.mxu0 0
      %1494 = vmatprep.mubr.bf16.mxu0 0
      %1495 = vmatmul.mubr.bf16.gmra.mrb[0].mxu0 %v1460
      %v1496 = vpop.f32.mrb[0].mxu0
      %v1497 = vadd.f32 %v1445, %v1496
      %v1498 = vpop.f32.mrb[0].mxu0
      %v1499 = vpop.f32.mrb[0].mxu0
      %v1500 = vpop.f32.mrb[0].mxu0
      %1501 = vdwg.mxu0
      %v1502 = vmax.f32 %v1497, 0.0
      %v1503 = vmul.f32 %v1502, %v1320
      %v1504 = vpack.c.bf16 %v1503, %v1503
      %v1506 = vsel %vm914, %v1504, 0
      %1508 = vmatprep.subr.bf16.mxu0 0
      %1509 = vmatpush1.bf16.msra.mxu0 %v1506
      %1510 = vmatprep.subr.bf16.mxu0 0
      %1511 = vmatpush1.bf16.msra.mxu0 0
      %1512 = vmatprep.subr.bf16.mxu0 0
      %1513 = vmatpush1.bf16.msra.mxu0 0
      %1514 = vmatprep.subr.bf16.mxu0 0
      %1515 = vmatpush1.bf16.msra.mxu0 0
      %1516 = vmatprep.subr.bf16.mxu0 0
      %1517 = vmatpush1.bf16.msra.mxu0 0
      %1518 = vmatprep.subr.bf16.mxu0 0
      %1519 = vmatpush1.bf16.msra.mxu0 0
      %1520 = vmatprep.subr.bf16.mxu0 0
      %1521 = vmatpush1.bf16.msra.mxu0 0
      %1522 = vmatprep.subr.bf16.mxu0 0
      %1523 = vmatpush1.bf16.msra.mxu0 0
      %1524 = vmatprep.subr.bf16.mxu0 0
      %1525 = vmatpush1.bf16.msra.mxu0 0
      %1526 = vmatprep.subr.bf16.mxu0 0
      %1527 = vmatpush1.bf16.msra.mxu0 0
      %1528 = vmatprep.subr.bf16.mxu0 0
      %1529 = vmatpush1.bf16.msra.mxu0 0
      %1530 = vmatprep.subr.bf16.mxu0 0
      %1531 = vmatpush1.bf16.msra.mxu0 0
      %1532 = vmatprep.subr.bf16.mxu0 0
      %1533 = vmatpush1.bf16.msra.mxu0 0
      %1534 = vmatprep.subr.bf16.mxu0 0
      %1535 = vmatpush1.bf16.msra.mxu0 0
      %1536 = vmatprep.subr.bf16.mxu0 0
      %1537 = vmatpush1.bf16.msra.mxu0 0
      %1538 = vmatprep.subr.bf16.mxu0 0
      %1539 = vmatpush1.bf16.msra.mxu0 0
      %1540 = vmatprep.mubr.bf16.mxu0 0
      %1541 = vmatmul.mubr.bf16.gmra.mrb[0].mxu0 %v912
      %v1542 = vpop.f32.mrb[0].mxu0
      %v1543 = vadd.f32 %v1503, %v1542
      %v1544 = vpop.f32.mrb[0].mxu0
      %v1545 = vpop.f32.mrb[0].mxu0
      %v1546 = vpop.f32.mrb[0].mxu0
      %1547 = vdwg.mxu0
      %v1548 = vpack.c.bf16 %v1543, %v1543
      %v1549 = vld [vmem:[%s15] sm:$0xf]
      %v1550 = vld [vmem:[%s15 + $0x4] sm:$0xf]
      %v1551 = vld [vmem:[%s15 + $0x8] sm:$0xf]
      %v1552 = vld [vmem:[%s15 + $0xc] sm:$0xf]
      %v1553 = vld [vmem:[%s16] sm:$0x1]
      %v1555 = vlaneseq
      %v1556 = vshrl.u32 %v1555, 7
      %v1557 = vsub.s32 0, %v1556
      %v1558 = vrot.slane %v1553, %v1557
      %v1564 = vunpack.c.l.b16 %v1549
      %v1565 = vunpack.c.l.b16 %v1550
      %v1566 = vunpack.c.l.b16 %v1551
      %v1567 = vunpack.c.l.b16 %v1552
      %v1568 = vpack.c.b16 %v1565, %v1564
      %v1569 = vpack.c.b16 %v1567, %v1566
      %v1573 = vsel %vm1047, %v1548, 0
      %1575 = vmatprep.subr.bf16.mxu0 0
      %1576 = vmatpush1.bf16.msra.mxu0 %v1568
      %1577 = vmatprep.subr.bf16.mxu0 0
      %1578 = vmatpush1.bf16.msra.mxu0 %v1569
      %1579 = vmatprep.subr.bf16.mxu0 0
      %1580 = vmatpush1.bf16.msra.mxu0 0
      %1581 = vmatprep.subr.bf16.mxu0 0
      %1582 = vmatpush1.bf16.msra.mxu0 0
      %1583 = vmatprep.subr.bf16.mxu0 0
      %1584 = vmatpush1.bf16.msra.mxu0 0
      %1585 = vmatprep.subr.bf16.mxu0 0
      %1586 = vmatpush1.bf16.msra.mxu0 0
      %1587 = vmatprep.subr.bf16.mxu0 0
      %1588 = vmatpush1.bf16.msra.mxu0 0
      %1589 = vmatprep.subr.bf16.mxu0 0
      %1590 = vmatpush1.bf16.msra.mxu0 0
      %1591 = vmatprep.subr.bf16.mxu0 0
      %1592 = vmatpush1.bf16.msra.mxu0 0
      %1593 = vmatprep.subr.bf16.mxu0 0
      %1594 = vmatpush1.bf16.msra.mxu0 0
      %1595 = vmatprep.subr.bf16.mxu0 0
      %1596 = vmatpush1.bf16.msra.mxu0 0
      %1597 = vmatprep.subr.bf16.mxu0 0
      %1598 = vmatpush1.bf16.msra.mxu0 0
      %1599 = vmatprep.subr.bf16.mxu0 0
      %1600 = vmatpush1.bf16.msra.mxu0 0
      %1601 = vmatprep.subr.bf16.mxu0 0
      %1602 = vmatpush1.bf16.msra.mxu0 0
      %1603 = vmatprep.subr.bf16.mxu0 0
      %1604 = vmatpush1.bf16.msra.mxu0 0
      %1605 = vmatprep.subr.bf16.mxu0 0
      %1606 = vmatpush1.bf16.msra.mxu0 0
      %1607 = vmatprep.mubr.bf16.mxu0 0
      %1608 = vmatmul.mubr.bf16.gmra.mrb[0].mxu0 %v1573
      %v1609 = vpop.f32.mrb[0].mxu0
      %v1610 = vadd.f32 %v1558, %v1609
      %v1611 = vpop.f32.mrb[0].mxu0
      %v1612 = vpop.f32.mrb[0].mxu0
      %v1613 = vpop.f32.mrb[0].mxu0
      %1614 = vdwg.mxu0
      %v1615 = vmax.f32 %v1610, 0.0
      %v1616 = vpack.c.bf16 %v1615, %v1615
      %v1617 = vld [vmem:[%s17] sm:$0xf]
      %v1618 = vld [vmem:[%s17 + $0x4] sm:$0xf]
      %v1619 = vld [vmem:[%s17 + $0x8] sm:$0xf]
      %v1620 = vld [vmem:[%s17 + $0xc] sm:$0xf]
      %v1621 = vld [vmem:[%s18] sm:$0x1]
      %v1623 = vlaneseq
      %v1624 = vshrl.u32 %v1623, 7
      %v1625 = vsub.s32 0, %v1624
      %v1626 = vrot.slane %v1621, %v1625
      %v1632 = vunpack.c.l.b16 %v1617
      %v1633 = vunpack.c.l.b16 %v1618
      %v1634 = vunpack.c.l.b16 %v1619
      %v1635 = vunpack.c.l.b16 %v1620
      %v1636 = vpack.c.b16 %v1633, %v1632
      %v1637 = vpack.c.b16 %v1635, %v1634
      %v1641 = vsel %vm1047, %v1616, 0
      %1643 = vmatprep.subr.bf16.mxu0 0
      %1644 = vmatpush1.bf16.msra.mxu0 %v1636
      %1645 = vmatprep.subr.bf16.mxu0 0
      %1646 = vmatpush1.bf16.msra.mxu0 %v1637
      %1647 = vmatprep.subr.bf16.mxu0 0
      %1648 = vmatpush1.bf16.msra.mxu0 0
      %1649 = vmatprep.subr.bf16.mxu0 0
      %1650 = vmatpush1.bf16.msra.mxu0 0
      %1651 = vmatprep.subr.bf16.mxu0 0
      %1652 = vmatpush1.bf16.msra.mxu0 0
      %1653 = vmatprep.subr.bf16.mxu0 0
      %1654 = vmatpush1.bf16.msra.mxu0 0
      %1655 = vmatprep.subr.bf16.mxu0 0
      %1656 = vmatpush1.bf16.msra.mxu0 0
      %1657 = vmatprep.subr.bf16.mxu0 0
      %1658 = vmatpush1.bf16.msra.mxu0 0
      %1659 = vmatprep.subr.bf16.mxu0 0
      %1660 = vmatpush1.bf16.msra.mxu0 0
      %1661 = vmatprep.subr.bf16.mxu0 0
      %1662 = vmatpush1.bf16.msra.mxu0 0
      %1663 = vmatprep.subr.bf16.mxu0 0
      %1664 = vmatpush1.bf16.msra.mxu0 0
      %1665 = vmatprep.subr.bf16.mxu0 0
      %1666 = vmatpush1.bf16.msra.mxu0 0
      %1667 = vmatprep.subr.bf16.mxu0 0
      %1668 = vmatpush1.bf16.msra.mxu0 0
      %1669 = vmatprep.subr.bf16.mxu0 0
      %1670 = vmatpush1.bf16.msra.mxu0 0
      %1671 = vmatprep.subr.bf16.mxu0 0
      %1672 = vmatpush1.bf16.msra.mxu0 0
      %1673 = vmatprep.subr.bf16.mxu0 0
      %1674 = vmatpush1.bf16.msra.mxu0 0
      %1675 = vmatprep.mubr.bf16.mxu0 0
      %1676 = vmatmul.mubr.bf16.gmra.mrb[0].mxu0 %v1641
      %v1677 = vpop.f32.mrb[0].mxu0
      %v1678 = vadd.f32 %v1626, %v1677
      %v1679 = vpop.f32.mrb[0].mxu0
      %v1680 = vpop.f32.mrb[0].mxu0
      %v1681 = vpop.f32.mrb[0].mxu0
      %1682 = vdwg.mxu0
      %v1683 = vmax.f32 %v1678, 0.0
      %v1684 = vmul.f32 %v1683, %v1320
      %v1685 = vpack.c.bf16 %v1684, %v1684
      %v1687 = vsel %vm914, %v1685, 0
      %1689 = vmatprep.subr.bf16.mxu0 0
      %1690 = vmatpush1.bf16.msra.mxu0 %v1687
      %1691 = vmatprep.subr.bf16.mxu0 0
      %1692 = vmatpush1.bf16.msra.mxu0 0
      %1693 = vmatprep.subr.bf16.mxu0 0
      %1694 = vmatpush1.bf16.msra.mxu0 0
      %1695 = vmatprep.subr.bf16.mxu0 0
      %1696 = vmatpush1.bf16.msra.mxu0 0
      %1697 = vmatprep.subr.bf16.mxu0 0
      %1698 = vmatpush1.bf16.msra.mxu0 0
      %1699 = vmatprep.subr.bf16.mxu0 0
      %1700 = vmatpush1.bf16.msra.mxu0 0
      %1701 = vmatprep.subr.bf16.mxu0 0
      %1702 = vmatpush1.bf16.msra.mxu0 0
      %1703 = vmatprep.subr.bf16.mxu0 0
      %1704 = vmatpush1.bf16.msra.mxu0 0
      %1705 = vmatprep.subr.bf16.mxu0 0
      %1706 = vmatpush1.bf16.msra.mxu0 0
      %1707 = vmatprep.subr.bf16.mxu0 0
      %1708 = vmatpush1.bf16.msra.mxu0 0
      %1709 = vmatprep.subr.bf16.mxu0 0
      %1710 = vmatpush1.bf16.msra.mxu0 0
      %1711 = vmatprep.subr.bf16.mxu0 0
      %1712 = vmatpush1.bf16.msra.mxu0 0
      %1713 = vmatprep.subr.bf16.mxu0 0
      %1714 = vmatpush1.bf16.msra.mxu0 0
      %1715 = vmatprep.subr.bf16.mxu0 0
      %1716 = vmatpush1.bf16.msra.mxu0 0
      %1717 = vmatprep.subr.bf16.mxu0 0
      %1718 = vmatpush1.bf16.msra.mxu0 0
      %1719 = vmatprep.subr.bf16.mxu0 0
      %1720 = vmatpush1.bf16.msra.mxu0 0
      %1721 = vmatprep.mubr.bf16.mxu0 0
      %1722 = vmatmul.mubr.bf16.gmra.mrb[0].mxu0 %v912
      %v1723 = vpop.f32.mrb[0].mxu0
      %v1724 = vadd.f32 %v1684, %v1723
      %v1725 = vpop.f32.mrb[0].mxu0
      %v1726 = vpop.f32.mrb[0].mxu0
      %v1727 = vpop.f32.mrb[0].mxu0
      %1728 = vdwg.mxu0
      %v1729 = vpack.c.bf16 %v1724, %v1724
      %v1730 = vld [vmem:[%s19] sm:$0xf]
      %v1731 = vld [vmem:[%s19 + $0x4] sm:$0xf]
      %v1732 = vld [vmem:[%s19 + $0x8] sm:$0xf]
      %v1733 = vld [vmem:[%s19 + $0xc] sm:$0xf]
      %v1734 = vld [vmem:[%s20] sm:$0x1]
      %v1736 = vlaneseq
      %v1737 = vshrl.u32 %v1736, 7
      %v1738 = vsub.s32 0, %v1737
      %v1739 = vrot.slane %v1734, %v1738
      %v1745 = vunpack.c.l.b16 %v1730
      %v1746 = vunpack.c.l.b16 %v1731
      %v1747 = vunpack.c.l.b16 %v1732
      %v1748 = vunpack.c.l.b16 %v1733
      %v1749 = vpack.c.b16 %v1746, %v1745
      %v1750 = vpack.c.b16 %v1748, %v1747
      %v1754 = vsel %vm1047, %v1729, 0
      %1756 = vmatprep.subr.bf16.mxu0 0
      %1757 = vmatpush1.bf16.msra.mxu0 %v1749
      %1758 = vmatprep.subr.bf16.mxu0 0
      %1759 = vmatpush1.bf16.msra.mxu0 %v1750
      %1760 = vmatprep.subr.bf16.mxu0 0
      %1761 = vmatpush1.bf16.msra.mxu0 0
      %1762 = vmatprep.subr.bf16.mxu0 0
      %1763 = vmatpush1.bf16.msra.mxu0 0
      %1764 = vmatprep.subr.bf16.mxu0 0
      %1765 = vmatpush1.bf16.msra.mxu0 0
      %1766 = vmatprep.subr.bf16.mxu0 0
      %1767 = vmatpush1.bf16.msra.mxu0 0
      %1768 = vmatprep.subr.bf16.mxu0 0
      %1769 = vmatpush1.bf16.msra.mxu0 0
      %1770 = vmatprep.subr.bf16.mxu0 0
      %1771 = vmatpush1.bf16.msra.mxu0 0
      %1772 = vmatprep.subr.bf16.mxu0 0
      %1773 = vmatpush1.bf16.msra.mxu0 0
      %1774 = vmatprep.subr.bf16.mxu0 0
      %1775 = vmatpush1.bf16.msra.mxu0 0
      %1776 = vmatprep.subr.bf16.mxu0 0
      %1777 = vmatpush1.bf16.msra.mxu0 0
      %1778 = vmatprep.subr.bf16.mxu0 0
      %1779 = vmatpush1.bf16.msra.mxu0 0
      %1780 = vmatprep.subr.bf16.mxu0 0
      %1781 = vmatpush1.bf16.msra.mxu0 0
      %1782 = vmatprep.subr.bf16.mxu0 0
      %1783 = vmatpush1.bf16.msra.mxu0 0
      %1784 = vmatprep.subr.bf16.mxu0 0
      %1785 = vmatpush1.bf16.msra.mxu0 0
      %1786 = vmatprep.subr.bf16.mxu0 0
      %1787 = vmatpush1.bf16.msra.mxu0 0
      %1788 = vmatprep.mubr.bf16.mxu0 0
      %1789 = vmatmul.mubr.bf16.gmra.mrb[0].mxu0 %v1754
      %v1790 = vpop.f32.mrb[0].mxu0
      %v1791 = vadd.f32 %v1739, %v1790
      %v1792 = vpop.f32.mrb[0].mxu0
      %v1793 = vpop.f32.mrb[0].mxu0
      %v1794 = vpop.f32.mrb[0].mxu0
      %1795 = vdwg.mxu0
      %v1796 = vmax.f32 %v1791, 0.0
      %v1797 = vpack.c.bf16 %v1796, %v1796
      %v1798 = vld [vmem:[%s21] sm:$0xf]
      %v1799 = vld [vmem:[%s21 + $0x4] sm:$0xf]
      %v1800 = vld [vmem:[%s21 + $0x8] sm:$0xf]
      %v1801 = vld [vmem:[%s21 + $0xc] sm:$0xf]
      %v1802 = vld [vmem:[%s22] sm:$0x1]
      %v1804 = vlaneseq
      %v1805 = vshrl.u32 %v1804, 7
      %v1806 = vsub.s32 0, %v1805
      %v1807 = vrot.slane %v1802, %v1806
      %v1813 = vunpack.c.l.b16 %v1798
      %v1814 = vunpack.c.l.b16 %v1799
      %v1815 = vunpack.c.l.b16 %v1800
      %v1816 = vunpack.c.l.b16 %v1801
      %v1817 = vpack.c.b16 %v1814, %v1813
      %v1818 = vpack.c.b16 %v1816, %v1815
      %v1822 = vsel %vm1047, %v1797, 0
      %1824 = vmatprep.subr.bf16.mxu0 0
      %1825 = vmatpush1.bf16.msra.mxu0 %v1817
      %1826 = vmatprep.subr.bf16.mxu0 0
      %1827 = vmatpush1.bf16.msra.mxu0 %v1818
      %1828 = vmatprep.subr.bf16.mxu0 0
      %1829 = vmatpush1.bf16.msra.mxu0 0
      %1830 = vmatprep.subr.bf16.mxu0 0
      %1831 = vmatpush1.bf16.msra.mxu0 0
      %1832 = vmatprep.subr.bf16.mxu0 0
      %1833 = vmatpush1.bf16.msra.mxu0 0
      %1834 = vmatprep.subr.bf16.mxu0 0
      %1835 = vmatpush1.bf16.msra.mxu0 0
      %1836 = vmatprep.subr.bf16.mxu0 0
      %1837 = vmatpush1.bf16.msra.mxu0 0
      %1838 = vmatprep.subr.bf16.mxu0 0
      %1839 = vmatpush1.bf16.msra.mxu0 0
      %1840 = vmatprep.subr.bf16.mxu0 0
      %1841 = vmatpush1.bf16.msra.mxu0 0
      %1842 = vmatprep.subr.bf16.mxu0 0
      %1843 = vmatpush1.bf16.msra.mxu0 0
      %1844 = vmatprep.subr.bf16.mxu0 0
      %1845 = vmatpush1.bf16.msra.mxu0 0
      %1846 = vmatprep.subr.bf16.mxu0 0
      %1847 = vmatpush1.bf16.msra.mxu0 0
      %1848 = vmatprep.subr.bf16.mxu0 0
      %1849 = vmatpush1.bf16.msra.mxu0 0
      %1850 = vmatprep.subr.bf16.mxu0 0
      %1851 = vmatpush1.bf16.msra.mxu0 0
      %1852 = vmatprep.subr.bf16.mxu0 0
      %1853 = vmatpush1.bf16.msra.mxu0 0
      %1854 = vmatprep.subr.bf16.mxu0 0
      %1855 = vmatpush1.bf16.msra.mxu0 0
      %1856 = vmatprep.mubr.bf16.mxu0 0
      %1857 = vmatmul.mubr.bf16.gmra.mrb[0].mxu0 %v1822
      %v1858 = vpop.f32.mrb[0].mxu0
      %v1859 = vadd.f32 %v1807, %v1858
      %v1860 = vpop.f32.mrb[0].mxu0
      %v1861 = vpop.f32.mrb[0].mxu0
      %v1862 = vpop.f32.mrb[0].mxu0
      %1863 = vdwg.mxu0
      %v1864 = vmax.f32 %v1859, 0.0
      %v1865 = vmul.f32 %v1864, %v1320
      %v1866 = vld [vmem:[%s886] sm:$0x1]
      %v1867 = vpack.c.bf16 %v1865, %v1865
      %v1868 = vld [vmem:[%s25] sm:$0xf]
      %v1869 = vld [vmem:[%s25 + $0x4] sm:$0xf]
      %v1870 = vld [vmem:[%s25 + $0x8] sm:$0xf]
      %v1871 = vld [vmem:[%s25 + $0xc] sm:$0xf]
      %v1876 = vunpack.c.l.b16 %v1868
      %v1877 = vunpack.c.l.b16 %v1869
      %v1878 = vunpack.c.l.b16 %v1870
      %v1879 = vunpack.c.l.b16 %v1871
      %v1880 = vpack.c.b16 %v1877, %v1876
      %v1881 = vpack.c.b16 %v1879, %v1878
      %v1885 = vsel %vm1047, %v1867, 0
      %1887 = vmatprep.subr.bf16.mxu0 0
      %1888 = vmatpush1.bf16.msra.mxu0 %v1880
      %1889 = vmatprep.subr.bf16.mxu0 0
      %1890 = vmatpush1.bf16.msra.mxu0 %v1881
      %1891 = vmatprep.subr.bf16.mxu0 0
      %1892 = vmatpush1.bf16.msra.mxu0 0
      %1893 = vmatprep.subr.bf16.mxu0 0
      %1894 = vmatpush1.bf16.msra.mxu0 0
      %1895 = vmatprep.subr.bf16.mxu0 0
      %1896 = vmatpush1.bf16.msra.mxu0 0
      %1897 = vmatprep.subr.bf16.mxu0 0
      %1898 = vmatpush1.bf16.msra.mxu0 0
      %1899 = vmatprep.subr.bf16.mxu0 0
      %1900 = vmatpush1.bf16.msra.mxu0 0
      %1901 = vmatprep.subr.bf16.mxu0 0
      %1902 = vmatpush1.bf16.msra.mxu0 0
      %1903 = vmatprep.subr.bf16.mxu0 0
      %1904 = vmatpush1.bf16.msra.mxu0 0
      %1905 = vmatprep.subr.bf16.mxu0 0
      %1906 = vmatpush1.bf16.msra.mxu0 0
      %1907 = vmatprep.subr.bf16.mxu0 0
      %1908 = vmatpush1.bf16.msra.mxu0 0
      %1909 = vmatprep.subr.bf16.mxu0 0
      %1910 = vmatpush1.bf16.msra.mxu0 0
      %1911 = vmatprep.subr.bf16.mxu0 0
      %1912 = vmatpush1.bf16.msra.mxu0 0
      %1913 = vmatprep.subr.bf16.mxu0 0
      %1914 = vmatpush1.bf16.msra.mxu0 0
      %1915 = vmatprep.subr.bf16.mxu0 0
      %1916 = vmatpush1.bf16.msra.mxu0 0
      %1917 = vmatprep.subr.bf16.mxu0 0
      %1918 = vmatpush1.bf16.msra.mxu0 0
      %1919 = vmatprep.mubr.bf16.mxu0 0
      %1920 = vmatmul.mubr.bf16.gmra.mrb[0].mxu0 %v1885
      %v1921 = vpop.f32.mrb[0].mxu0
      %v1922 = vadd.f32 0.0, %v1921
      %v1923 = vpop.f32.mrb[0].mxu0
      %v1924 = vpop.f32.mrb[0].mxu0
      %v1925 = vpop.f32.mrb[0].mxu0
      %1926 = vdwg.mxu0
      %v1927 = vpack.c.bf16 %v1922, %v1922
      %1929 = vrot.lane.b32.xlu0 %v1922, 127
      %v1930 = vpop.permute.xlu0 %1929
      %v1933 = vsel %vm914, %v1927, 0
      %1935 = vmatprep.subr.bf16.mxu0 0
      %1936 = vmatpush1.bf16.msra.mxu0 %v1933
      %1937 = vmatprep.subr.bf16.mxu0 0
      %1938 = vmatpush1.bf16.msra.mxu0 0
      %1939 = vmatprep.subr.bf16.mxu0 0
      %1940 = vmatpush1.bf16.msra.mxu0 0
      %1941 = vmatprep.subr.bf16.mxu0 0
      %1942 = vmatpush1.bf16.msra.mxu0 0
      %1943 = vmatprep.subr.bf16.mxu0 0
      %1944 = vmatpush1.bf16.msra.mxu0 0
      %1945 = vmatprep.subr.bf16.mxu0 0
      %1946 = vmatpush1.bf16.msra.mxu0 0
      %1947 = vmatprep.subr.bf16.mxu0 0
      %1948 = vmatpush1.bf16.msra.mxu0 0
      %1949 = vmatprep.subr.bf16.mxu0 0
      %1950 = vmatpush1.bf16.msra.mxu0 0
      %1951 = vmatprep.subr.bf16.mxu0 0
      %1952 = vmatpush1.bf16.msra.mxu0 0
      %1953 = vmatprep.subr.bf16.mxu0 0
      %1954 = vmatpush1.bf16.msra.mxu0 0
      %1955 = vmatprep.subr.bf16.mxu0 0
      %1956 = vmatpush1.bf16.msra.mxu0 0
      %1957 = vmatprep.subr.bf16.mxu0 0
      %1958 = vmatpush1.bf16.msra.mxu0 0
      %1959 = vmatprep.subr.bf16.mxu0 0
      %1960 = vmatpush1.bf16.msra.mxu0 0
      %1961 = vmatprep.subr.bf16.mxu0 0
      %1962 = vmatpush1.bf16.msra.mxu0 0
      %1963 = vmatprep.subr.bf16.mxu0 0
      %1964 = vmatpush1.bf16.msra.mxu0 0
      %1965 = vmatprep.subr.bf16.mxu0 0
      %1966 = vmatpush1.bf16.msra.mxu0 0
      %1967 = vmatprep.mubr.bf16.mxu0 0
      %1968 = vmatmul.mubr.bf16.gmra.mrb[0].mxu0 %v912
      %v1969 = vpop.f32.mrb[0].mxu0
      %v1970 = vadd.f32 %v1930, %v1969
      %v1971 = vpop.f32.mrb[0].mxu0
      %v1972 = vpop.f32.mrb[0].mxu0
      %v1973 = vpop.f32.mrb[0].mxu0
      %1974 = vdwg.mxu0
      %v1975 = vld [vmem:[#allocation3] sm:$0x1]
      %v1977 = vlaneseq
      %v1978 = vshrl.u32 %v1977, 7
      %v1979 = vsub.s32 0, %v1978
      %v1980 = vrot.slane %v1975, %v1979
      %v1982 = vadd.f32 %v1970, %v1980
      %v1983 = vtanh.pop %v1982
      %1985 = vset.pattern.permute.xlu0 0
      %1986 = vperm.xlu0 %1985, %v1983
      %v1987 = vpop.permute.xlu0 %1986
      %v1989 = vsel %vm902, %v1987, 0.0
      %v1990 = vsel %vm905, %v1989, 0.0
      %v1991 = vrot.slane %v1990, 4
      %v1992 = vadd.f32 %v1990, %v1991
      %v1993 = vrot.slane %v1992, 2
      %v1994 = vadd.f32 %v1992, %v1993
      %v1995 = vrot.slane %v1994, 1
      %v1996 = vadd.f32 %v1994, %v1995
      %vm1997 = vcmp.gt.f32.partialorder %v1996, %v1987
      %vm1998 = vcmp.eq.f32.partialorder %v1996, %v1987
      %vm1999 = vmand %vm1998, %vm903
      %vm2000 = vmor %vm1997, %vm1999
      %v2001 = vsel %vm2000, 1.0, 0.0
      %v2003 = vsel %vm905, %v2001, 0
      %2005 = vmatprep.subr.mxu0 0.0
      %2006 = vmatpush1.msra.mxu0 %v1315
      %2007 = vmatprep.subr.mxu0 0.0
      %2008 = vmatpush1.msra.mxu0 0.0
      %2009 = vmatprep.subr.mxu0 0.0
      %2010 = vmatpush1.msra.mxu0 0.0
      %2011 = vmatprep.subr.mxu0 0.0
      %2012 = vmatpush1.msra.mxu0 0.0
      %2013 = vmatprep.subr.mxu0 0.0
      %2014 = vmatpush1.msra.mxu0 0.0
      %2015 = vmatprep.subr.mxu0 0.0
      %2016 = vmatpush1.msra.mxu0 0.0
      %2017 = vmatprep.subr.mxu0 0.0
      %2018 = vmatpush1.msra.mxu0 0.0
      %2019 = vmatprep.subr.mxu0 0.0
      %2020 = vmatpush1.msra.mxu0 0.0
      %2021 = vmatprep.subr.mxu0 0.0
      %2022 = vmatpush1.msra.mxu0 0.0
      %2023 = vmatprep.subr.mxu0 0.0
      %2024 = vmatpush1.msra.mxu0 0.0
      %2025 = vmatprep.subr.mxu0 0.0
      %2026 = vmatpush1.msra.mxu0 0.0
      %2027 = vmatprep.subr.mxu0 0.0
      %2028 = vmatpush1.msra.mxu0 0.0
      %2029 = vmatprep.subr.mxu0 0.0
      %2030 = vmatpush1.msra.mxu0 0.0
      %2031 = vmatprep.subr.mxu0 0.0
      %2032 = vmatpush1.msra.mxu0 0.0
      %2033 = vmatprep.subr.mxu0 0.0
      %2034 = vmatpush1.msra.mxu0 0.0
      %2035 = vmatprep.subr.mxu0 0.0
      %2036 = vmatpush1.msra.mxu0 0.0
      %2037 = vmatprep.subr.mxu0 0.0
      %2038 = vmatpush1.msra.mxu0 0.0
      %2039 = vmatprep.subr.mxu0 0.0
      %2040 = vmatpush1.msra.mxu0 0.0
      %2041 = vmatprep.subr.mxu0 0.0
      %2042 = vmatpush1.msra.mxu0 0.0
      %2043 = vmatprep.subr.mxu0 0.0
      %2044 = vmatpush1.msra.mxu0 0.0
      %2045 = vmatprep.subr.mxu0 0.0
      %2046 = vmatpush1.msra.mxu0 0.0
      %2047 = vmatprep.subr.mxu0 0.0
      %2048 = vmatpush1.msra.mxu0 0.0
      %2049 = vmatprep.subr.mxu0 0.0
      %2050 = vmatpush1.msra.mxu0 0.0
      %2051 = vmatprep.subr.mxu0 0.0
      %2052 = vmatpush1.msra.mxu0 0.0
      %2053 = vmatprep.subr.mxu0 0.0
      %2054 = vmatpush1.msra.mxu0 0.0
      %2055 = vmatprep.subr.mxu0 0.0
      %2056 = vmatpush1.msra.mxu0 0.0
      %2057 = vmatprep.subr.mxu0 0.0
      %2058 = vmatpush1.msra.mxu0 0.0
      %2059 = vmatprep.subr.mxu0 0.0
      %2060 = vmatpush1.msra.mxu0 0.0
      %2061 = vmatprep.subr.mxu0 0.0
      %2062 = vmatpush1.msra.mxu0 0.0
      %2063 = vmatprep.subr.mxu0 0.0
      %2064 = vmatpush1.msra.mxu0 0.0
      %2065 = vmatprep.subr.mxu0 0.0
      %2066 = vmatpush1.msra.mxu0 0.0
      %2067 = vmatprep.subr.mxu0 0.0
      %2068 = vmatpush1.msra.mxu0 0.0
      %2069 = vmatprep.mubr.f32.mxu0 0.0
      %2070 = vmatmul.mubr.f32.gmra.mrb[0].mxu0 %v2003
      %v2071 = vpop.f32.mrb[0].mxu0
      %v2072 = vadd.f32 0.0, %v2071
      %v2073 = vpop.f32.mrb[0].mxu0
      %2074 = vdwg.mxu0
      %v2076 = vlaneseq
      %v2077 = vshrl.u32 %v2076, 7
      %v2078 = vsub.s32 0, %v2077
      %v2079 = vrot.slane %v1866, %v2078
      %vm2081 = vcmp.lt.f32.partialorder %v2072, %v2079
      %v2082 = vsel %vm2081, 1.0, 0.0
      %v2083 = vmul.f32 %v2082, %v1315
      %v2084 = vmul.f32 %v1865, %v1987
      %2086 = vset.pattern.permute.xlu0 0
      %2087 = vperm.xlu0 %2086, %v2083
      %v2088 = vpop.permute.xlu0 %2087
      %v2090 = vmul.f32 %v2084, %v2088
      %v2091 = vsel %vm1047, %v2090, 0.0
      %v2092 = vrot.slane %v2091, 4
      %v2093 = vadd.f32 %v2091, %v2092
      %v2094 = vrot.slane %v2093, 2
      %v2095 = vadd.f32 %v2093, %v2094
      %v2096 = vrot.slane %v2095, 1
      %v2097 = vadd.f32 %v2095, %v2096
      %v2098 = vld [vmem:[%s889] sm:$0x1]
      %2100 = vset.pattern.permute.xlu0 0
      %2101 = vperm.xlu0 %2100, %v2098
      %v2102 = vpop.permute.xlu0 %2101
      %v2104 = vlaneseq
      %v2105 = vshrl.u32 %v2104, 7
      %v2106 = vsub.s32 0, %v2105
      %v2107 = vrot.slane %v2102, %v2106
      %v2108 = vmul.f32 %v2097, %v2107
      %vm2109 = vcmp.gt.f32.partialorder %v2083, 0.5
      %v2110 = vsel %vm2109, 1, 0
      %2111 = vset.pattern.permute.xlu0 0
      %2112 = vperm.xlu0 %2111, %v2110
      %v2113 = vpop.permute.xlu0 %2112
      %vm2114 = vcmp.eq.s32.totalorder %v2113, 1
      %v2115 = vsel %vm2114, %v2090, -3e+38
      %v2116 = vsel %vm1047, %v2115, -inf
      %v2117 = vrot.slane %v2116, 4
      %v2118 = vmax.f32 %v2116, %v2117
      %v2119 = vrot.slane %v2118, 2
      %v2120 = vmax.f32 %v2118, %v2119
      %v2121 = vrot.slane %v2120, 1
      %v2122 = vmax.f32 %v2120, %v2121
      %v2123 = vadd.s32 %v899, 8
      %v2124 = vadd.s32 %v899, 16
      %v2125 = vadd.s32 %v899, 24
      %vm2126 = vcmp.eq.s32.totalorder %v901, %v899
      %vm2127 = vcmp.eq.s32.totalorder %v901, %v2123
      %vm2128 = vcmp.eq.s32.totalorder %v901, %v2124
      %vm2129 = vcmp.eq.s32.totalorder %v901, %v2125
      %v2130 = vsel %vm2126, 1.0, 0.0
      %v2131 = vsel %vm2127, 1.0, 0.0
      %v2132 = vsel %vm2128, 1.0, 0.0
      %v2133 = vsel %vm2129, 1.0, 0.0
      %v2134 = vadd.s32 %v899, 32
      %v2135 = vadd.s32 %v2123, 32
      %v2136 = vadd.s32 %v2124, 32
      %v2137 = vadd.s32 %v2125, 32
      %vm2138 = vcmp.eq.s32.totalorder %v901, %v2134
      %vm2139 = vcmp.eq.s32.totalorder %v901, %v2135
      %vm2140 = vcmp.eq.s32.totalorder %v901, %v2136
      %vm2141 = vcmp.eq.s32.totalorder %v901, %v2137
      %v2142 = vsel %vm2138, 1.0, 0.0
      %v2143 = vsel %vm2139, 1.0, 0.0
      %v2144 = vsel %vm2140, 1.0, 0.0
      %v2145 = vsel %vm2141, 1.0, 0.0
      %v2147 = vsel %vm1047, %v2122, 0
      %2149 = vmatprep.subr.mxu0 0.0
      %2150 = vmatpush1.msra.mxu0 %v2142
      %2151 = vmatprep.subr.mxu0 0.0
      %2152 = vmatpush1.msra.mxu0 %v2143
      %2153 = vmatprep.subr.mxu0 0.0
      %2154 = vmatpush1.msra.mxu0 %v2144
      %2155 = vmatprep.subr.mxu0 0.0
      %2156 = vmatpush1.msra.mxu0 %v2145
      %2157 = vmatprep.subr.mxu0 0.0
      %2158 = vmatpush1.msra.mxu0 0.0
      %2159 = vmatprep.subr.mxu0 0.0
      %2160 = vmatpush1.msra.mxu0 0.0
      %2161 = vmatprep.subr.mxu0 0.0
      %2162 = vmatpush1.msra.mxu0 0.0
      %2163 = vmatprep.subr.mxu0 0.0
      %2164 = vmatpush1.msra.mxu0 0.0
      %2165 = vmatprep.subr.mxu0 0.0
      %2166 = vmatpush1.msra.mxu0 0.0
      %2167 = vmatprep.subr.mxu0 0.0
      %2168 = vmatpush1.msra.mxu0 0.0
      %2169 = vmatprep.subr.mxu0 0.0
      %2170 = vmatpush1.msra.mxu0 0.0
      %2171 = vmatprep.subr.mxu0 0.0
      %2172 = vmatpush1.msra.mxu0 0.0
      %2173 = vmatprep.subr.mxu0 0.0
      %2174 = vmatpush1.msra.mxu0 0.0
      %2175 = vmatprep.subr.mxu0 0.0
      %2176 = vmatpush1.msra.mxu0 0.0
      %2177 = vmatprep.subr.mxu0 0.0
      %2178 = vmatpush1.msra.mxu0 0.0
      %2179 = vmatprep.subr.mxu0 0.0
      %2180 = vmatpush1.msra.mxu0 0.0
      %2181 = vmatprep.subr.mxu0 0.0
      %2182 = vmatpush1.msra.mxu0 0.0
      %2183 = vmatprep.subr.mxu0 0.0
      %2184 = vmatpush1.msra.mxu0 0.0
      %2185 = vmatprep.subr.mxu0 0.0
      %2186 = vmatpush1.msra.mxu0 0.0
      %2187 = vmatprep.subr.mxu0 0.0
      %2188 = vmatpush1.msra.mxu0 0.0
      %2189 = vmatprep.subr.mxu0 0.0
      %2190 = vmatpush1.msra.mxu0 0.0
      %2191 = vmatprep.subr.mxu0 0.0
      %2192 = vmatpush1.msra.mxu0 0.0
      %2193 = vmatprep.subr.mxu0 0.0
      %2194 = vmatpush1.msra.mxu0 0.0
      %2195 = vmatprep.subr.mxu0 0.0
      %2196 = vmatpush1.msra.mxu0 0.0
      %2197 = vmatprep.subr.mxu0 0.0
      %2198 = vmatpush1.msra.mxu0 0.0
      %2199 = vmatprep.subr.mxu0 0.0
      %2200 = vmatpush1.msra.mxu0 0.0
      %2201 = vmatprep.subr.mxu0 0.0
      %2202 = vmatpush1.msra.mxu0 0.0
      %2203 = vmatprep.subr.mxu0 0.0
      %2204 = vmatpush1.msra.mxu0 0.0
      %2205 = vmatprep.subr.mxu0 0.0
      %2206 = vmatpush1.msra.mxu0 0.0
      %2207 = vmatprep.subr.mxu0 0.0
      %2208 = vmatpush1.msra.mxu0 0.0
      %2209 = vmatprep.subr.mxu0 0.0
      %2210 = vmatpush1.msra.mxu0 0.0
      %2211 = vmatprep.subr.mxu0 0.0
      %2212 = vmatpush1.msra.mxu0 0.0
      %2213 = vmatprep.mubr.f32.mxu0 0.0
      %2214 = vmatmul.mubr.f32.gmra.mrb[0].mxu0 %v2147
      %v2215 = vpop.f32.mrb[0].mxu0
      %v2216 = vadd.f32 0.0, %v2215
      %v2217 = vpop.f32.mrb[0].mxu0
      %2218 = vdwg.mxu0
      %v2220 = vsel %vm1047, %v2108, 0
      %2222 = vmatprep.subr.mxu0 0.0
      %2223 = vmatpush1.msra.mxu0 %v2130
      %2224 = vmatprep.subr.mxu0 0.0
      %2225 = vmatpush1.msra.mxu0 %v2131
      %2226 = vmatprep.subr.mxu0 0.0
      %2227 = vmatpush1.msra.mxu0 %v2132
      %2228 = vmatprep.subr.mxu0 0.0
      %2229 = vmatpush1.msra.mxu0 %v2133
      %2230 = vmatprep.subr.mxu0 0.0
      %2231 = vmatpush1.msra.mxu0 0.0
      %2232 = vmatprep.subr.mxu0 0.0
      %2233 = vmatpush1.msra.mxu0 0.0
      %2234 = vmatprep.subr.mxu0 0.0
      %2235 = vmatpush1.msra.mxu0 0.0
      %2236 = vmatprep.subr.mxu0 0.0
      %2237 = vmatpush1.msra.mxu0 0.0
      %2238 = vmatprep.subr.mxu0 0.0
      %2239 = vmatpush1.msra.mxu0 0.0
      %2240 = vmatprep.subr.mxu0 0.0
      %2241 = vmatpush1.msra.mxu0 0.0
      %2242 = vmatprep.subr.mxu0 0.0
      %2243 = vmatpush1.msra.mxu0 0.0
      %2244 = vmatprep.subr.mxu0 0.0
      %2245 = vmatpush1.msra.mxu0 0.0
      %2246 = vmatprep.subr.mxu0 0.0
      %2247 = vmatpush1.msra.mxu0 0.0
      %2248 = vmatprep.subr.mxu0 0.0
      %2249 = vmatpush1.msra.mxu0 0.0
      %2250 = vmatprep.subr.mxu0 0.0
      %2251 = vmatpush1.msra.mxu0 0.0
      %2252 = vmatprep.subr.mxu0 0.0
      %2253 = vmatpush1.msra.mxu0 0.0
      %2254 = vmatprep.subr.mxu0 0.0
      %2255 = vmatpush1.msra.mxu0 0.0
      %2256 = vmatprep.subr.mxu0 0.0
      %2257 = vmatpush1.msra.mxu0 0.0
      %2258 = vmatprep.subr.mxu0 0.0
      %2259 = vmatpush1.msra.mxu0 0.0
      %2260 = vmatprep.subr.mxu0 0.0
      %2261 = vmatpush1.msra.mxu0 0.0
      %2262 = vmatprep.subr.mxu0 0.0
      %2263 = vmatpush1.msra.mxu0 0.0
      %2264 = vmatprep.subr.mxu0 0.0
      %2265 = vmatpush1.msra.mxu0 0.0
      %2266 = vmatprep.subr.mxu0 0.0
      %2267 = vmatpush1.msra.mxu0 0.0
      %2268 = vmatprep.subr.mxu0 0.0
      %2269 = vmatpush1.msra.mxu0 0.0
      %2270 = vmatprep.subr.mxu0 0.0
      %2271 = vmatpush1.msra.mxu0 0.0
      %2272 = vmatprep.subr.mxu0 0.0
      %2273 = vmatpush1.msra.mxu0 0.0
      %2274 = vmatprep.subr.mxu0 0.0
      %2275 = vmatpush1.msra.mxu0 0.0
      %2276 = vmatprep.subr.mxu0 0.0
      %2277 = vmatpush1.msra.mxu0 0.0
      %2278 = vmatprep.subr.mxu0 0.0
      %2279 = vmatpush1.msra.mxu0 0.0
      %2280 = vmatprep.subr.mxu0 0.0
      %2281 = vmatpush1.msra.mxu0 0.0
      %2282 = vmatprep.subr.mxu0 0.0
      %2283 = vmatpush1.msra.mxu0 0.0
      %2284 = vmatprep.subr.mxu0 0.0
      %2285 = vmatpush1.msra.mxu0 0.0
      %2286 = vmatprep.mubr.f32.mxu0 0.0
      %2287 = vmatmul.mubr.f32.gmra.mrb[0].mxu0 %v2220
      %v2288 = vpop.f32.mrb[0].mxu0
      %v2289 = vadd.f32 %v2216, %v2288
      %v2290 = vpop.f32.mrb[0].mxu0
      %2291 = vdwg.mxu0
      %vm2292 = vcmp.eq.s32.totalorder %v899, 0
      %v2293 = vlaneseq
      %v2294 = vshrl.u32 %v2293, 7
      %v2295 = vsub.s32 0, %v2294
      %v2296 = vrot.slane %v2289, %v2295
      %v2297 = vsel %vm2292, %v2296, 0.0
      %2298 = vst [vmem:[%s893] sm:$0xff] %v2297
      %p2299 = scmp.lt.s32.totalorder %s42, 1
      %s2300 = scalar_select %p2299, %s42, 1
      %s2301 = smul.addr %s2300, 8
      %s2302 = scalar_lea.vmem %s27, %s2301
      // Predicated region
      $region129: #{gin_forward.1} parent=127 // pred_check
        %p2303 = pneg %p657
      $region130: #{gin_forward.1} parent=127 // pred_check_branch
        %2305 = sbr.rel (%p2303) target = $region132
      $region131: #{gin_forward.1} parent=127 // pred_region
        _
      $region132: #{gin_forward.1} parent=127 // pred_fallthru
        _
    $region128: #{gin_forward.1} parent=5 // pred_fallthru
      _
    %p2306 = scmp.le.s32.totalorder 2, %s37
    // Predicated region
    $region133: #{gin_forward.1} parent=5 // pred_check
      %p2307 = pneg %p2306
    $region134: #{gin_forward.1} parent=5 // pred_check_branch
      %2309 = sbr.rel (%p2307) target = $region136
    $region135: #{gin_forward.1} parent=5 // pred_region
      %s2310 = ssub.s32 %s37, 2
      // Predicated region
      $region137: #{gin_forward.1} parent=135 // pred_check
        %p2311 = pneg %p663
      $region138: #{gin_forward.1} parent=135 // pred_check_branch
        %2313 = sbr.rel (%p2311) target = $region140
      $region139: #{gin_forward.1} parent=135 // pred_region
        %p2314 = scmp.lt.s32.totalorder %s43, 1
        %s2315 = scalar_select %p2314, %s43, 1
        %s2316 = smul.addr %s2315, 8
        %s2317 = scalar_lea.vmem %s27, %s2316
      $region140: #{gin_forward.1} parent=135 // pred_fallthru
        _
    $region136: #{gin_forward.1} parent=5 // pred_fallthru
      _
  $region6: #{gin_forward.1} parent=0 // loop_footer
    %s41 = sadd.s32 1, %s37
  $region7: #{gin_forward.1} parent=0 // loop_footer_branch
    %36 = sbr.rel target = $region3
  $region8: #{gin_forward.1} parent=0 // loop_exit
    _

</llo_original>
